<compile_context>
chip_gen: v7x
topology: tpu7x:2x2x1
jax: 0.10.0
libtpu: 0.0.40
codegen_flags: <defaults>
</compile_context>

<pallas_src>
import jax
import jax.numpy as jnp
from jax.experimental import pallas as pl
from jax.experimental.pallas import tpu as pltpu

LANE = 128


def _round_up(x, m):
    return (x + m - 1) // m * m


# ----------------------------------------------------------------------------
# Pallas kernel: fused conv1 + concat + refine (three 1x1 convs + BN + ReLU)
# ----------------------------------------------------------------------------
def _decoder_kernel(x_ref, xl_ref,
                    w1_ref, s1_ref, b1_ref,
                    wr1a_ref, wr1b_ref, s2_ref, b2_ref,
                    wr2_ref, s3_ref, b3_ref,
                    o_ref):
    # conv1 branch: xl (tp, C1) bf16 @ W1 (C1, 128) bf16 -> f32 acc -> BN -> ReLU
    xlp = jnp.dot(xl_ref[...], w1_ref[...], preferred_element_type=jnp.float32)
    xlp = jnp.maximum(xlp * s1_ref[...] + b1_ref[...], 0.0)

    # refine[0]: concat([x, xlp]) @ Wr1  ==  x @ Wr1a + xlp @ Wr1b   (bf16 MXU)
    h = jnp.dot(x_ref[...], wr1a_ref[...], preferred_element_type=jnp.float32)
    h = h + jnp.dot(xlp.astype(jnp.bfloat16), wr1b_ref[...],
                    preferred_element_type=jnp.float32)
    h = jnp.maximum(h * s2_ref[...] + b2_ref[...], 0.0)

    # refine[1]: h @ Wr2 -> BN -> ReLU  (output kept f32; lane-dense 128-mult cols)
    out = jnp.dot(h.astype(jnp.bfloat16), wr2_ref[...],
                  preferred_element_type=jnp.float32)
    o_ref[...] = jnp.maximum(out * s3_ref[...] + b3_ref[...], 0.0)
    # TODO(synk): optionally emit bf16 output if the consumer tolerates it
    # (halves writeback bandwidth on mem-bound shapes).


def decoder_pallas(x_flat, xl_flat, kernel_params, *, tp=512):
    """x_flat: (P, C2) bf16, xl_flat: (P, C1) bf16. Returns (P, out_padded) f32."""
    P, c2 = x_flat.shape
    _, c1 = xl_flat.shape
    (w1, s1, b1, wr1a, wr1b, s2, b2, wr2, s3, b3) = kernel_params
    out_p = wr2.shape[1]

    # Pad pixel count up to a tile multiple (no hard assert; tail is sliced off).
    P_pad = _round_up(P, tp)
    if P_pad != P:
        pad = P_pad - P
        x_flat = jnp.pad(x_flat, ((0, pad), (0, 0)))
        xl_flat = jnp.pad(xl_flat, ((0, pad), (0, 0)))

    def full(a):
        # whole-array block (weights / BN params), same block every grid step
        return pl.BlockSpec(a.shape, lambda i, _n=len(a.shape): (0,) * _n)

    out = pl.pallas_call(
        _decoder_kernel,
        out_shape=jax.ShapeDtypeStruct((P_pad, out_p), jnp.float32),
        grid_spec=pltpu.PrefetchScalarGridSpec(
            num_scalar_prefetch=0,
            grid=(P_pad // tp,),
            in_specs=[
                pl.BlockSpec((tp, c2), lambda i: (i, 0)),   # upsampled x tile
                pl.BlockSpec((tp, c1), lambda i: (i, 0)),   # xl tile
                full(w1), full(s1), full(b1),
                full(wr1a), full(wr1b), full(s2), full(b2),
                full(wr2), full(s3), full(b3),
            ],
            out_specs=pl.BlockSpec((tp, out_p), lambda i: (i, 0)),
        ),
        compiler_params=pltpu.CompilerParams(
            dimension_semantics=("parallel",)),
    )(x_flat, xl_flat, w1, s1, b1, wr1a, wr1b, s2, b2, wr2, s3, b3)
    return out[:P]


# ----------------------------------------------------------------------------
# Glue: NHWC bilinear resize (align_corners=True, PyTorch semantics) + layout
# ----------------------------------------------------------------------------
def bilinear_nhwc_align_corners(x_nhwc, out_h, out_w):
    # TODO(synk): gather-based resize kept in plain JAX (not the hot path).
    n, h_in, w_in, c = x_nhwc.shape
    if out_h == h_in and out_w == w_in:
        return x_nhwc

    def src(out_size, in_size):
        if out_size == 1 or in_size == 1:
            return jnp.zeros((out_size,), jnp.float32)
        scale = (in_size - 1) / (out_size - 1)
        return jnp.arange(out_size, dtype=jnp.float32) * scale

    ys = src(out_h, h_in)
    xs = src(out_w, w_in)
    y0 = jnp.floor(ys).astype(jnp.int32)
    x0 = jnp.floor(xs).astype(jnp.int32)
    y1 = jnp.minimum(y0 + 1, h_in - 1)
    x1 = jnp.minimum(x0 + 1, w_in - 1)
    wy = (ys - y0.astype(jnp.float32))[None, :, None, None]
    wx = (xs - x0.astype(jnp.float32))[None, None, :, None]

    top = x_nhwc[:, y0, :, :]
    bot = x_nhwc[:, y1, :, :]
    tl, tr = top[:, :, x0, :], top[:, :, x1, :]
    bl, br = bot[:, :, x0, :], bot[:, :, x1, :]
    t = tl * (1.0 - wx) + tr * wx
    b = bl * (1.0 - wx) + br * wx
    return t * (1.0 - wy) + b * wy


def fold_bn(gamma, beta, mean, var, eps=1e-5):
    scale = gamma / jnp.sqrt(var + eps)
    bias = beta - mean * scale
    return scale[None, :].astype(jnp.float32), bias[None, :].astype(jnp.float32)


def init_params(key, in_dim1, in_dim2, inter_dim, out_dim):
    """Raw (unpadded, f32) parameters mirroring the PyTorch module."""
    ks = jax.random.split(key, 16)

    def bn(k, c):
        k1, k2, k3, k4 = jax.random.split(k, 4)
        gamma = 1.0 + 0.1 * jax.random.normal(k1, (c,), jnp.float32)
        beta = 0.1 * jax.random.normal(k2, (c,), jnp.float32)
        mean = 0.1 * jax.random.normal(k3, (c,), jnp.float32)
        var = 1.0 + 0.1 * jax.random.uniform(k4, (c,), jnp.float32)
        return fold_bn(gamma, beta, mean, var)

    # conv1: Conv2d(in_dim1, 48, 1, bias=False) stored as (Cin, Cout)
    w1 = 0.05 * jax.random.normal(ks[0], (in_dim1, 48), jnp.float32)
    s1, b1 = bn(ks[1], 48)
    # refine conv #1: Conv2d(in_dim2 + 48, inter_dim, 1) split into x / xlp halves
    wr1 = 0.05 * jax.random.normal(ks[2], (in_dim2 + 48, inter_dim), jnp.float32)
    wr1a, wr1b = wr1[:in_dim2], wr1[in_dim2:]
    s2, b2 = bn(ks[3], inter_dim)
    # refine conv #2: Conv2d(inter_dim, out_dim, 1)
    wr2 = 0.05 * jax.random.normal(ks[4], (inter_dim, out_dim), jnp.float32)
    s3, b3 = bn(ks[5], out_dim)
    return (w1, s1, b1, wr1a, wr1b, s2, b2, wr2, s3, b3)


def prepare_params(params):
    """Pad channel dims to lane-dense (x128) widths and cast weights to bf16.

    Padded xlp / h lanes always multiply ZERO weight rows, so the math is
    unchanged; padded output lanes are sliced off in the wrapper.
    """
    (w1, s1, b1, wr1a, wr1b, s2, b2, wr2, s3, b3) = params
    c1, xlp_dim = w1.shape
    c2, inter = wr1a.shape
    _, out_dim = wr2.shape
    xlp_p = _round_up(xlp_dim, LANE)
    inter_p = _round_up(inter, LANE)
    out_p = _round_up(out_dim, LANE)

    def pad2(a, rows, cols):
        r, c = a.shape
        return jnp.pad(a, ((0, rows - r), (0, cols - c)))

    bf = jnp.bfloat16
    w1p = pad2(w1, c1, xlp_p).astype(bf)
    s1p, b1p = pad2(s1, 1, xlp_p), pad2(b1, 1, xlp_p)
    wr1ap = pad2(wr1a, c2, inter_p).astype(bf)
    wr1bp = pad2(wr1b, xlp_p, inter_p).astype(bf)   # zero rows for padded xlp lanes
    s2p, b2p = pad2(s2, 1, inter_p), pad2(b2, 1, inter_p)
    wr2p = pad2(wr2, inter_p, out_p).astype(bf)     # zero rows for padded h lanes
    s3p, b3p = pad2(s3, 1, out_p), pad2(b3, 1, out_p)

    kernel_params = (w1p, s1p, b1p, wr1ap, wr1bp, s2p, b2p, wr2p, s3p, b3p)
    return kernel_params, out_dim


def decoder_module3(x_nchw, xl_nchw, prepared, *, tp=512):
    kernel_params, out_dim = prepared
    n, c2, _, _ = x_nchw.shape
    _, c1, h, w = xl_nchw.shape

    # NHWC path: one cheap low-resolution transpose, resize in NHWC, then
    # flattening to (P, C) is a pure reshape (no full-size transpose pass).
    x_nhwc = jnp.transpose(x_nchw, (0, 2, 3, 1))
    x_up = bilinear_nhwc_align_corners(x_nhwc, h, w)
    x_flat = x_up.reshape(n * h * w, c2).astype(jnp.bfloat16)
    xl_flat = (jnp.transpose(xl_nchw, (0, 2, 3, 1))
               .reshape(n * h * w, c1).astype(jnp.bfloat16))

    out_flat = decoder_pallas(x_flat, xl_flat, kernel_params, tp=tp)
    out_flat = out_flat[:, :out_dim]
    # TODO(synk): final transpose only to match the PyTorch NCHW interface; a
    # fully-NHWC model would drop it.
    return jnp.transpose(out_flat.reshape(n, h, w, out_dim), (0, 3, 1, 2))


# ----------------------------------------------------------------------------
# Pure-JAX reference (same bf16 matmul precision as the kernel) for validation
# ----------------------------------------------------------------------------
def decoder_module3_ref(x_nchw, xl_nchw, params):
    (w1, s1, b1, wr1a, wr1b, s2, b2, wr2, s3, b3) = params
    n, c2, _, _ = x_nchw.shape
    _, c1, h, w = xl_nchw.shape
    x_up = bilinear_nhwc_align_corners(
        jnp.transpose(x_nchw, (0, 2, 3, 1)), h, w).reshape(n * h * w, c2)
    xl = jnp.transpose(xl_nchw, (0, 2, 3, 1)).reshape(n * h * w, c1)

    bf = jnp.bfloat16
    dot = lambda a, b: jnp.dot(a.astype(bf), b.astype(bf),
                               preferred_element_type=jnp.float32)
    xlp = jnp.maximum(dot(xl, w1) * s1 + b1, 0.0)
    hid = jnp.maximum((dot(x_up, wr1a) + dot(xlp, wr1b)) * s2 + b2, 0.0)
    out = jnp.maximum(dot(hid, wr2) * s3 + b3, 0.0)
    out_dim = wr2.shape[1]
    return jnp.transpose(out.reshape(n, h, w, out_dim), (0, 3, 1, 2))


if __name__ == "__main__":
    # Small shapes consistent with the module (scaled-down channel dims).
    in_dim1, in_dim2, inter_dim, out_dim = 32, 32, 32, 32
    N, H, W = 2, 16, 16          # xl spatial
    h_lo, w_lo = 8, 8            # x comes in at lower resolution -> upsampled

    key = jax.random.PRNGKey(0)
    kx, kxl, kp = jax.random.split(key, 3)
    x = jax.random.normal(kx, (N, in_dim2, h_lo, w_lo), jnp.float32)
    xl = jax.random.normal(kxl, (N, in_dim1, H, W), jnp.float32)
    params = init_params(kp, in_dim1, in_dim2, inter_dim, out_dim)
    prepared = prepare_params(params)

    out = jax.block_until_ready(decoder_module3(x, xl, prepared, tp=512))
    ref = jax.block_until_ready(decoder_module3_ref(x, xl, params))

    assert out.shape == (N, out_dim, H, W), out.shape
    err = float(jnp.max(jnp.abs(out - ref)))
    assert jnp.allclose(out, ref, atol=1e-2, rtol=1e-2), f"mismatch vs reference ({err})"
    print("KERNEL_OK")
</pallas_src>

<mosaic_0001>
module attributes {stable_mosaic.version = 11 : i64} {
  func.func @_decoder_kernel(%arg0: i32, %arg1: memref<512x32xbf16, #tpu.memory_space<vmem>>, %arg2: memref<512x32xbf16, #tpu.memory_space<vmem>>, %arg3: memref<32x128xbf16, #tpu.memory_space<vmem>>, %arg4: memref<1x128xf32, #tpu.memory_space<vmem>>, %arg5: memref<1x128xf32, #tpu.memory_space<vmem>>, %arg6: memref<32x128xbf16, #tpu.memory_space<vmem>>, %arg7: memref<128x128xbf16, #tpu.memory_space<vmem>>, %arg8: memref<1x128xf32, #tpu.memory_space<vmem>>, %arg9: memref<1x128xf32, #tpu.memory_space<vmem>>, %arg10: memref<128x128xbf16, #tpu.memory_space<vmem>>, %arg11: memref<1x128xf32, #tpu.memory_space<vmem>>, %arg12: memref<1x128xf32, #tpu.memory_space<vmem>>, %arg13: memref<512x128xf32, #tpu.memory_space<vmem>>) attributes {dimension_semantics = [#tpu.dimension_semantics<parallel>], iteration_bounds = array<i64: 1>, scalar_prefetch = 0 : i64, scratch_operands = 0 : i64, tpu.core_type = #tpu.core_type<tc>, window_params = [{transform_indices = @transform_0, window_bounds = array<i64: 512, 32>}, {transform_indices = @transform_1, window_bounds = array<i64: 512, 32>}, {pipeline_mode = #tpu.pipeline_mode<synchronous>, transform_indices = @transform_2, window_bounds = array<i64: 32, 128>}, {pipeline_mode = #tpu.pipeline_mode<synchronous>, transform_indices = @transform_3, window_bounds = array<i64: 1, 128>}, {pipeline_mode = #tpu.pipeline_mode<synchronous>, transform_indices = @transform_4, window_bounds = array<i64: 1, 128>}, {pipeline_mode = #tpu.pipeline_mode<synchronous>, transform_indices = @transform_5, window_bounds = array<i64: 32, 128>}, {pipeline_mode = #tpu.pipeline_mode<synchronous>, transform_indices = @transform_6, window_bounds = array<i64: 128, 128>}, {pipeline_mode = #tpu.pipeline_mode<synchronous>, transform_indices = @transform_7, window_bounds = array<i64: 1, 128>}, {pipeline_mode = #tpu.pipeline_mode<synchronous>, transform_indices = @transform_8, window_bounds = array<i64: 1, 128>}, {pipeline_mode = #tpu.pipeline_mode<synchronous>, transform_indices = @transform_9, window_bounds = array<i64: 128, 128>}, {pipeline_mode = #tpu.pipeline_mode<synchronous>, transform_indices = @transform_10, window_bounds = array<i64: 1, 128>}, {pipeline_mode = #tpu.pipeline_mode<synchronous>, transform_indices = @transform_11, window_bounds = array<i64: 1, 128>}, {transform_indices = @transform_12, window_bounds = array<i64: 512, 128>}]} {
    %c0 = arith.constant 0 : index
    %c0_0 = arith.constant 0 : index
    %0 = vector.load %arg2[%c0, %c0_0] : memref<512x32xbf16, #tpu.memory_space<vmem>>, vector<512x32xbf16>
    %c0_1 = arith.constant 0 : index
    %c0_2 = arith.constant 0 : index
    %1 = vector.load %arg3[%c0_1, %c0_2] : memref<32x128xbf16, #tpu.memory_space<vmem>>, vector<32x128xbf16>
    %cst = arith.constant dense<0.000000e+00> : vector<512x128xf32>
    %2 = tpu.matmul %0, %1, %cst {dimension_numbers = #tpu.dot_dimension_numbers<[1], [0], [0], [1], [0, 0, 1, 1], [], []>} : vector<512x32xbf16>, vector<32x128xbf16>, vector<512x128xf32> -> vector<512x128xf32>
    %c0_3 = arith.constant 0 : index
    %c0_4 = arith.constant 0 : index
    %3 = vector.load %arg4[%c0_3, %c0_4] : memref<1x128xf32, #tpu.memory_space<vmem>>, vector<1x128xf32>
    %4 = vector.broadcast %3 : vector<1x128xf32> to vector<512x128xf32>
    %5 = arith.mulf %2, %4 : vector<512x128xf32>
    %c0_5 = arith.constant 0 : index
    %c0_6 = arith.constant 0 : index
    %6 = vector.load %arg5[%c0_5, %c0_6] : memref<1x128xf32, #tpu.memory_space<vmem>>, vector<1x128xf32>
    %7 = vector.broadcast %6 : vector<1x128xf32> to vector<512x128xf32>
    %8 = arith.addf %5, %7 : vector<512x128xf32>
    %cst_7 = arith.constant 0.000000e+00 : f32
    %9 = vector.broadcast %cst_7 : f32 to vector<512x128xf32>
    %10 = arith.maximumf %8, %9 : vector<512x128xf32>
    %c0_8 = arith.constant 0 : index
    %c0_9 = arith.constant 0 : index
    %11 = vector.load %arg1[%c0_8, %c0_9] : memref<512x32xbf16, #tpu.memory_space<vmem>>, vector<512x32xbf16>
    %c0_10 = arith.constant 0 : index
    %c0_11 = arith.constant 0 : index
    %12 = vector.load %arg6[%c0_10, %c0_11] : memref<32x128xbf16, #tpu.memory_space<vmem>>, vector<32x128xbf16>
    %cst_12 = arith.constant dense<0.000000e+00> : vector<512x128xf32>
    %13 = tpu.matmul %11, %12, %cst_12 {dimension_numbers = #tpu.dot_dimension_numbers<[1], [0], [0], [1], [0, 0, 1, 1], [], []>} : vector<512x32xbf16>, vector<32x128xbf16>, vector<512x128xf32> -> vector<512x128xf32>
    %14 = arith.truncf %10 : vector<512x128xf32> to vector<512x128xbf16>
    %c0_13 = arith.constant 0 : index
    %c0_14 = arith.constant 0 : index
    %15 = vector.load %arg7[%c0_13, %c0_14] : memref<128x128xbf16, #tpu.memory_space<vmem>>, vector<128x128xbf16>
    %cst_15 = arith.constant dense<0.000000e+00> : vector<512x128xf32>
    %16 = tpu.matmul %14, %15, %cst_15 {dimension_numbers = #tpu.dot_dimension_numbers<[1], [0], [0], [1], [0, 0, 1, 1], [], []>} : vector<512x128xbf16>, vector<128x128xbf16>, vector<512x128xf32> -> vector<512x128xf32>
    %17 = arith.addf %13, %16 : vector<512x128xf32>
    %c0_16 = arith.constant 0 : index
    %c0_17 = arith.constant 0 : index
    %18 = vector.load %arg8[%c0_16, %c0_17] : memref<1x128xf32, #tpu.memory_space<vmem>>, vector<1x128xf32>
    %19 = vector.broadcast %18 : vector<1x128xf32> to vector<512x128xf32>
    %20 = arith.mulf %17, %19 : vector<512x128xf32>
    %c0_18 = arith.constant 0 : index
    %c0_19 = arith.constant 0 : index
    %21 = vector.load %arg9[%c0_18, %c0_19] : memref<1x128xf32, #tpu.memory_space<vmem>>, vector<1x128xf32>
    %22 = vector.broadcast %21 : vector<1x128xf32> to vector<512x128xf32>
    %23 = arith.addf %20, %22 : vector<512x128xf32>
    %cst_20 = arith.constant 0.000000e+00 : f32
    %24 = vector.broadcast %cst_20 : f32 to vector<512x128xf32>
    %25 = arith.maximumf %23, %24 : vector<512x128xf32>
    %26 = arith.truncf %25 : vector<512x128xf32> to vector<512x128xbf16>
    %c0_21 = arith.constant 0 : index
    %c0_22 = arith.constant 0 : index
    %27 = vector.load %arg10[%c0_21, %c0_22] : memref<128x128xbf16, #tpu.memory_space<vmem>>, vector<128x128xbf16>
    %cst_23 = arith.constant dense<0.000000e+00> : vector<512x128xf32>
    %28 = tpu.matmul %26, %27, %cst_23 {dimension_numbers = #tpu.dot_dimension_numbers<[1], [0], [0], [1], [0, 0, 1, 1], [], []>} : vector<512x128xbf16>, vector<128x128xbf16>, vector<512x128xf32> -> vector<512x128xf32>
    %c0_24 = arith.constant 0 : index
    %c0_25 = arith.constant 0 : index
    %29 = vector.load %arg11[%c0_24, %c0_25] : memref<1x128xf32, #tpu.memory_space<vmem>>, vector<1x128xf32>
    %30 = vector.broadcast %29 : vector<1x128xf32> to vector<512x128xf32>
    %31 = arith.mulf %28, %30 : vector<512x128xf32>
    %c0_26 = arith.constant 0 : index
    %c0_27 = arith.constant 0 : index
    %32 = vector.load %arg12[%c0_26, %c0_27] : memref<1x128xf32, #tpu.memory_space<vmem>>, vector<1x128xf32>
    %33 = vector.broadcast %32 : vector<1x128xf32> to vector<512x128xf32>
    %34 = arith.addf %31, %33 : vector<512x128xf32>
    %cst_28 = arith.constant 0.000000e+00 : f32
    %35 = vector.broadcast %cst_28 : f32 to vector<512x128xf32>
    %36 = arith.maximumf %34, %35 : vector<512x128xf32>
    %c0_29 = arith.constant 0 : index
    %c0_30 = arith.constant 0 : index
    %37 = vector.load %arg13[%c0_29, %c0_30] : memref<512x128xf32, #tpu.memory_space<vmem>>, vector<512x128xf32>
    tpu.vector_store %arg13[%c0_29, %c0_30], %36 {strides = array<i32>} : memref<512x128xf32, #tpu.memory_space<vmem>>, vector<512x128xf32>,
    return
  }
  func.func @transform_0(%arg0: i32) -> (i32, i32) {
    %c0_i32 = arith.constant 0 : i32
    %c0_i32_0 = arith.constant 0 : i32
    return %arg0, %c0_i32 : i32, i32
  }
  func.func @transform_1(%arg0: i32) -> (i32, i32) {
    %c0_i32 = arith.constant 0 : i32
    %c0_i32_0 = arith.constant 0 : i32
    return %arg0, %c0_i32 : i32, i32
  }
  func.func @transform_2(%arg0: i32) -> (i32, i32) {
    %c0_i32 = arith.constant 0 : i32
    %c0_i32_0 = arith.constant 0 : i32
    %c0_i32_1 = arith.constant 0 : i32
    return %c0_i32, %c0_i32_0 : i32, i32
  }
  func.func @transform_3(%arg0: i32) -> (i32, i32) {
    %c0_i32 = arith.constant 0 : i32
    %c0_i32_0 = arith.constant 0 : i32
    %c0_i32_1 = arith.constant 0 : i32
    return %c0_i32, %c0_i32_0 : i32, i32
  }
  func.func @transform_4(%arg0: i32) -> (i32, i32) {
    %c0_i32 = arith.constant 0 : i32
    %c0_i32_0 = arith.constant 0 : i32
    %c0_i32_1 = arith.constant 0 : i32
    return %c0_i32, %c0_i32_0 : i32, i32
  }
  func.func @transform_5(%arg0: i32) -> (i32, i32) {
    %c0_i32 = arith.constant 0 : i32
    %c0_i32_0 = arith.constant 0 : i32
    %c0_i32_1 = arith.constant 0 : i32
    return %c0_i32, %c0_i32_0 : i32, i32
  }
  func.func @transform_6(%arg0: i32) -> (i32, i32) {
    %c0_i32 = arith.constant 0 : i32
    %c0_i32_0 = arith.constant 0 : i32
    %c0_i32_1 = arith.constant 0 : i32
    return %c0_i32, %c0_i32_0 : i32, i32
  }
  func.func @transform_7(%arg0: i32) -> (i32, i32) {
    %c0_i32 = arith.constant 0 : i32
    %c0_i32_0 = arith.constant 0 : i32
    %c0_i32_1 = arith.constant 0 : i32
    return %c0_i32, %c0_i32_0 : i32, i32
  }
  func.func @transform_8(%arg0: i32) -> (i32, i32) {
    %c0_i32 = arith.constant 0 : i32
    %c0_i32_0 = arith.constant 0 : i32
    %c0_i32_1 = arith.constant 0 : i32
    return %c0_i32, %c0_i32_0 : i32, i32
  }
  func.func @transform_9(%arg0: i32) -> (i32, i32) {
    %c0_i32 = arith.constant 0 : i32
    %c0_i32_0 = arith.constant 0 : i32
    %c0_i32_1 = arith.constant 0 : i32
    return %c0_i32, %c0_i32_0 : i32, i32
  }
  func.func @transform_10(%arg0: i32) -> (i32, i32) {
    %c0_i32 = arith.constant 0 : i32
    %c0_i32_0 = arith.constant 0 : i32
    %c0_i32_1 = arith.constant 0 : i32
    return %c0_i32, %c0_i32_0 : i32, i32
  }
  func.func @transform_11(%arg0: i32) -> (i32, i32) {
    %c0_i32 = arith.constant 0 : i32
    %c0_i32_0 = arith.constant 0 : i32
    %c0_i32_1 = arith.constant 0 : i32
    return %c0_i32, %c0_i32_0 : i32, i32
  }
  func.func @transform_12(%arg0: i32) -> (i32, i32) {
    %c0_i32 = arith.constant 0 : i32
    %c0_i32_0 = arith.constant 0 : i32
    return %arg0, %c0_i32 : i32, i32
  }
}

</mosaic_0001>

<llo_original>
// kernel: tpu_custom_call.1
$region0: #{tpu_custom_call.1}
  #allocation0 [shape = 'u32[]', space=smem, size = 0x4, offset = 0x4, fixed_abs, tag = 'smem constant byte address 0x4 - core index']
  #allocation1 [shape = 'u32[144,128]{1,0:T(1,128)}', space=vmem, size = 0x12000, scoped, tag = 'internal scratch']
  %s0 = inlined_call_operand.vmem [shape: bf16[512,32], index: 0, kind: input, shape index: {}]
  %s1 = inlined_call_operand.vmem [shape: bf16[512,32], index: 1, kind: input, shape index: {}]
  %s2 = inlined_call_operand.vmem [shape: bf16[32,128], index: 2, kind: input, shape index: {}]
  %s3 = inlined_call_operand.vmem [shape: f32[1,128], index: 3, kind: input, shape index: {}]
  %s4 = inlined_call_operand.vmem [shape: f32[1,128], index: 4, kind: input, shape index: {}]
  %s5 = inlined_call_operand.vmem [shape: bf16[32,128], index: 5, kind: input, shape index: {}]
  %s6 = inlined_call_operand.vmem [shape: bf16[128,128], index: 6, kind: input, shape index: {}]
  %s7 = inlined_call_operand.vmem [shape: f32[1,128], index: 7, kind: input, shape index: {}]
  %s8 = inlined_call_operand.vmem [shape: f32[1,128], index: 8, kind: input, shape index: {}]
  %s9 = inlined_call_operand.vmem [shape: bf16[128,128], index: 9, kind: input, shape index: {}]
  %s10 = inlined_call_operand.vmem [shape: f32[1,128], index: 10, kind: input, shape index: {}]
  %s11 = inlined_call_operand.vmem [shape: f32[1,128], index: 11, kind: input, shape index: {}]
  %s12 = inlined_call_operand.hbm [shape: f32[512,128], index: 12, kind: output, shape index: {}]
  %s13 = sld [smem:[#allocation0]]
  $region58: #{tpu_custom_call.1} parent=0
    _
  %s15 = ssub.s32 1, %s13
  %s16 = scalar_select 0, %s15, %s13
  $region1: #{tpu_custom_call.1} parent=0
    #allocation2 [shape = 'u8[262144]{0}', space=vmem, size = 0x40000, scoped, tag = 'output window, operand 0, single buffered']
    #allocation3 [shape = 's32[1]{0}', space=sflag, size = 0x4, scoped, tag = 'scoped memory for tpu_custom_call.1']
    %17 = vsyncpa [#allocation3], 0
    // Predicated region
    $region2: #{tpu_custom_call.1} parent=1 // pred_check
      _
    $region3: #{tpu_custom_call.1} parent=1 // pred_check_branch
      %19 = sbr.rel (0) target = $region5
    $region4: #{tpu_custom_call.1} parent=1 // pred_region
      _
    $region5: #{tpu_custom_call.1} parent=1 // pred_fallthru
      _
    // Predicated region
    $region6: #{tpu_custom_call.1} parent=1 // pred_check
      _
    $region7: #{tpu_custom_call.1} parent=1 // pred_check_branch
      %21 = sbr.rel (0) target = $region9
    $region8: #{tpu_custom_call.1} parent=1 // pred_region
      _
    $region9: #{tpu_custom_call.1} parent=1 // pred_fallthru
      _
    // Predicated region
    $region10: #{tpu_custom_call.1} parent=1 // pred_check
      _
    $region11: #{tpu_custom_call.1} parent=1 // pred_check_branch
      %23 = sbr.rel (0) target = $region13
    $region12: #{tpu_custom_call.1} parent=1 // pred_region
      _
    $region13: #{tpu_custom_call.1} parent=1 // pred_fallthru
      _
    // Predicated region
    $region14: #{tpu_custom_call.1} parent=1 // pred_check
      _
    $region15: #{tpu_custom_call.1} parent=1 // pred_check_branch
      %25 = sbr.rel (0) target = $region17
    $region16: #{tpu_custom_call.1} parent=1 // pred_region
      _
    $region17: #{tpu_custom_call.1} parent=1 // pred_fallthru
      _
    // Predicated region
    $region18: #{tpu_custom_call.1} parent=1 // pred_check
      _
    $region19: #{tpu_custom_call.1} parent=1 // pred_check_branch
      %27 = sbr.rel (0) target = $region21
    $region20: #{tpu_custom_call.1} parent=1 // pred_region
      _
    $region21: #{tpu_custom_call.1} parent=1 // pred_fallthru
      _
    // Predicated region
    $region22: #{tpu_custom_call.1} parent=1 // pred_check
      _
    $region23: #{tpu_custom_call.1} parent=1 // pred_check_branch
      %29 = sbr.rel (0) target = $region25
    $region24: #{tpu_custom_call.1} parent=1 // pred_region
      _
    $region25: #{tpu_custom_call.1} parent=1 // pred_fallthru
      _
    // Predicated region
    $region26: #{tpu_custom_call.1} parent=1 // pred_check
      _
    $region27: #{tpu_custom_call.1} parent=1 // pred_check_branch
      %31 = sbr.rel (0) target = $region29
    $region28: #{tpu_custom_call.1} parent=1 // pred_region
      _
    $region29: #{tpu_custom_call.1} parent=1 // pred_fallthru
      _
    // Predicated region
    $region30: #{tpu_custom_call.1} parent=1 // pred_check
      _
    $region31: #{tpu_custom_call.1} parent=1 // pred_check_branch
      %33 = sbr.rel (0) target = $region33
    $region32: #{tpu_custom_call.1} parent=1 // pred_region
      _
    $region33: #{tpu_custom_call.1} parent=1 // pred_fallthru
      _
    // Predicated region
    $region34: #{tpu_custom_call.1} parent=1 // pred_check
      _
    $region35: #{tpu_custom_call.1} parent=1 // pred_check_branch
      %35 = sbr.rel (0) target = $region37
    $region36: #{tpu_custom_call.1} parent=1 // pred_region
      _
    $region37: #{tpu_custom_call.1} parent=1 // pred_fallthru
      _
    // Predicated region
    $region38: #{tpu_custom_call.1} parent=1 // pred_check
      _
    $region39: #{tpu_custom_call.1} parent=1 // pred_check_branch
      %37 = sbr.rel (0) target = $region41
    $region40: #{tpu_custom_call.1} parent=1 // pred_region
      _
    $region41: #{tpu_custom_call.1} parent=1 // pred_fallthru
      _
    // Predicated region
    $region42: #{tpu_custom_call.1} parent=1 // pred_check
      _
    $region43: #{tpu_custom_call.1} parent=1 // pred_check_branch
      %39 = sbr.rel (0) target = $region45
    $region44: #{tpu_custom_call.1} parent=1 // pred_region
      _
    $region45: #{tpu_custom_call.1} parent=1 // pred_fallthru
      _
    // Predicated region
    $region46: #{tpu_custom_call.1} parent=1 // pred_check
      _
    $region47: #{tpu_custom_call.1} parent=1 // pred_check_branch
      %41 = sbr.rel (0) target = $region49
    $region48: #{tpu_custom_call.1} parent=1 // pred_region
      _
    $region49: #{tpu_custom_call.1} parent=1 // pred_fallthru
      _
    %v43 = vld [vmem:[%s1] sm:$0xf]
    %v44 = vld [vmem:[%s1 + $0x4] sm:$0xf]
    %v45 = vld [vmem:[%s1 + $0x8] sm:$0xf]
    %v46 = vld [vmem:[%s1 + $0xc] sm:$0xf]
    %v47 = vld [vmem:[%s1 + $0x10] sm:$0xf]
    %v48 = vld [vmem:[%s1 + $0x14] sm:$0xf]
    %v49 = vld [vmem:[%s1 + $0x18] sm:$0xf]
    %v50 = vld [vmem:[%s1 + $0x1c] sm:$0xf]
    %v51 = vld [vmem:[%s1 + $0x20] sm:$0xf]
    %v52 = vld [vmem:[%s1 + $0x24] sm:$0xf]
    %v53 = vld [vmem:[%s1 + $0x28] sm:$0xf]
    %v54 = vld [vmem:[%s1 + $0x2c] sm:$0xf]
    %v55 = vld [vmem:[%s1 + $0x30] sm:$0xf]
    %v56 = vld [vmem:[%s1 + $0x34] sm:$0xf]
    %v57 = vld [vmem:[%s1 + $0x38] sm:$0xf]
    %v58 = vld [vmem:[%s1 + $0x3c] sm:$0xf]
    %v59 = vld [vmem:[%s1 + $0x40] sm:$0xf]
    %v60 = vld [vmem:[%s1 + $0x44] sm:$0xf]
    %v61 = vld [vmem:[%s1 + $0x48] sm:$0xf]
    %v62 = vld [vmem:[%s1 + $0x4c] sm:$0xf]
    %v63 = vld [vmem:[%s1 + $0x50] sm:$0xf]
    %v64 = vld [vmem:[%s1 + $0x54] sm:$0xf]
    %v65 = vld [vmem:[%s1 + $0x58] sm:$0xf]
    %v66 = vld [vmem:[%s1 + $0x5c] sm:$0xf]
    %v67 = vld [vmem:[%s1 + $0x60] sm:$0xf]
    %v68 = vld [vmem:[%s1 + $0x64] sm:$0xf]
    %v69 = vld [vmem:[%s1 + $0x68] sm:$0xf]
    %v70 = vld [vmem:[%s1 + $0x6c] sm:$0xf]
    %v71 = vld [vmem:[%s1 + $0x70] sm:$0xf]
    %v72 = vld [vmem:[%s1 + $0x74] sm:$0xf]
    %v73 = vld [vmem:[%s1 + $0x78] sm:$0xf]
    %v74 = vld [vmem:[%s1 + $0x7c] sm:$0xf]
    %v75 = vld [vmem:[%s1 + $0x80] sm:$0xf]
    %v76 = vld [vmem:[%s1 + $0x84] sm:$0xf]
    %v77 = vld [vmem:[%s1 + $0x88] sm:$0xf]
    %v78 = vld [vmem:[%s1 + $0x8c] sm:$0xf]
    %v79 = vld [vmem:[%s1 + $0x90] sm:$0xf]
    %v80 = vld [vmem:[%s1 + $0x94] sm:$0xf]
    %v81 = vld [vmem:[%s1 + $0x98] sm:$0xf]
    %v82 = vld [vmem:[%s1 + $0x9c] sm:$0xf]
    %v83 = vld [vmem:[%s1 + $0xa0] sm:$0xf]
    %v84 = vld [vmem:[%s1 + $0xa4] sm:$0xf]
    %v85 = vld [vmem:[%s1 + $0xa8] sm:$0xf]
    %v86 = vld [vmem:[%s1 + $0xac] sm:$0xf]
    %v87 = vld [vmem:[%s1 + $0xb0] sm:$0xf]
    %v88 = vld [vmem:[%s1 + $0xb4] sm:$0xf]
    %v89 = vld [vmem:[%s1 + $0xb8] sm:$0xf]
    %v90 = vld [vmem:[%s1 + $0xbc] sm:$0xf]
    %v91 = vld [vmem:[%s1 + $0xc0] sm:$0xf]
    %v92 = vld [vmem:[%s1 + $0xc4] sm:$0xf]
    %v93 = vld [vmem:[%s1 + $0xc8] sm:$0xf]
    %v94 = vld [vmem:[%s1 + $0xcc] sm:$0xf]
    %v95 = vld [vmem:[%s1 + $0xd0] sm:$0xf]
    %v96 = vld [vmem:[%s1 + $0xd4] sm:$0xf]
    %v97 = vld [vmem:[%s1 + $0xd8] sm:$0xf]
    %v98 = vld [vmem:[%s1 + $0xdc] sm:$0xf]
    %v99 = vld [vmem:[%s1 + $0xe0] sm:$0xf]
    %v100 = vld [vmem:[%s1 + $0xe4] sm:$0xf]
    %v101 = vld [vmem:[%s1 + $0xe8] sm:$0xf]
    %v102 = vld [vmem:[%s1 + $0xec] sm:$0xf]
    %v103 = vld [vmem:[%s1 + $0xf0] sm:$0xf]
    %v104 = vld [vmem:[%s1 + $0xf4] sm:$0xf]
    %v105 = vld [vmem:[%s1 + $0xf8] sm:$0xf]
    %v106 = vld [vmem:[%s1 + $0xfc] sm:$0xf]
    %v107 = vld [vmem:[%s2] sm:$0xf]
    %v108 = vld [vmem:[%s2 + $0x4] sm:$0xf]
    %v109 = vld [vmem:[%s2 + $0x8] sm:$0xf]
    %v110 = vld [vmem:[%s2 + $0xc] sm:$0xf]
    %v175 = vunpack.c.l.b16 %v43
    %v176 = vunpack.c.l.b16 %v44
    %v177 = vunpack.c.l.b16 %v45
    %v178 = vunpack.c.l.b16 %v46
    %v179 = vunpack.c.l.b16 %v47
    %v180 = vunpack.c.l.b16 %v48
    %v181 = vunpack.c.l.b16 %v49
    %v182 = vunpack.c.l.b16 %v50
    %v183 = vunpack.c.l.b16 %v51
    %v184 = vunpack.c.l.b16 %v52
    %v185 = vunpack.c.l.b16 %v53
    %v186 = vunpack.c.l.b16 %v54
    %v187 = vunpack.c.l.b16 %v55
    %v188 = vunpack.c.l.b16 %v56
    %v189 = vunpack.c.l.b16 %v57
    %v190 = vunpack.c.l.b16 %v58
    %v191 = vunpack.c.l.b16 %v59
    %v192 = vunpack.c.l.b16 %v60
    %v193 = vunpack.c.l.b16 %v61
    %v194 = vunpack.c.l.b16 %v62
    %v195 = vunpack.c.l.b16 %v63
    %v196 = vunpack.c.l.b16 %v64
    %v197 = vunpack.c.l.b16 %v65
    %v198 = vunpack.c.l.b16 %v66
    %v199 = vunpack.c.l.b16 %v67
    %v200 = vunpack.c.l.b16 %v68
    %v201 = vunpack.c.l.b16 %v69
    %v202 = vunpack.c.l.b16 %v70
    %v203 = vunpack.c.l.b16 %v71
    %v204 = vunpack.c.l.b16 %v72
    %v205 = vunpack.c.l.b16 %v73
    %v206 = vunpack.c.l.b16 %v74
    %v207 = vunpack.c.l.b16 %v75
    %v208 = vunpack.c.l.b16 %v76
    %v209 = vunpack.c.l.b16 %v77
    %v210 = vunpack.c.l.b16 %v78
    %v211 = vunpack.c.l.b16 %v79
    %v212 = vunpack.c.l.b16 %v80
    %v213 = vunpack.c.l.b16 %v81
    %v214 = vunpack.c.l.b16 %v82
    %v215 = vunpack.c.l.b16 %v83
    %v216 = vunpack.c.l.b16 %v84
    %v217 = vunpack.c.l.b16 %v85
    %v218 = vunpack.c.l.b16 %v86
    %v219 = vunpack.c.l.b16 %v87
    %v220 = vunpack.c.l.b16 %v88
    %v221 = vunpack.c.l.b16 %v89
    %v222 = vunpack.c.l.b16 %v90
    %v223 = vunpack.c.l.b16 %v91
    %v224 = vunpack.c.l.b16 %v92
    %v225 = vunpack.c.l.b16 %v93
    %v226 = vunpack.c.l.b16 %v94
    %v227 = vunpack.c.l.b16 %v95
    %v228 = vunpack.c.l.b16 %v96
    %v229 = vunpack.c.l.b16 %v97
    %v230 = vunpack.c.l.b16 %v98
    %v231 = vunpack.c.l.b16 %v99
    %v232 = vunpack.c.l.b16 %v100
    %v233 = vunpack.c.l.b16 %v101
    %v234 = vunpack.c.l.b16 %v102
    %v235 = vunpack.c.l.b16 %v103
    %v236 = vunpack.c.l.b16 %v104
    %v237 = vunpack.c.l.b16 %v105
    %v238 = vunpack.c.l.b16 %v106
    %v239 = vpack.c.b16 %v176, %v175
    %v240 = vpack.c.b16 %v178, %v177
    %v241 = vpack.c.b16 %v180, %v179
    %v242 = vpack.c.b16 %v182, %v181
    %v243 = vpack.c.b16 %v184, %v183
    %v244 = vpack.c.b16 %v186, %v185
    %v245 = vpack.c.b16 %v188, %v187
    %v246 = vpack.c.b16 %v190, %v189
    %v247 = vpack.c.b16 %v192, %v191
    %v248 = vpack.c.b16 %v194, %v193
    %v249 = vpack.c.b16 %v196, %v195
    %v250 = vpack.c.b16 %v198, %v197
    %v251 = vpack.c.b16 %v200, %v199
    %v252 = vpack.c.b16 %v202, %v201
    %v253 = vpack.c.b16 %v204, %v203
    %v254 = vpack.c.b16 %v206, %v205
    %v255 = vpack.c.b16 %v208, %v207
    %v256 = vpack.c.b16 %v210, %v209
    %v257 = vpack.c.b16 %v212, %v211
    %v258 = vpack.c.b16 %v214, %v213
    %v259 = vpack.c.b16 %v216, %v215
    %v260 = vpack.c.b16 %v218, %v217
    %v261 = vpack.c.b16 %v220, %v219
    %v262 = vpack.c.b16 %v222, %v221
    %v263 = vpack.c.b16 %v224, %v223
    %v264 = vpack.c.b16 %v226, %v225
    %v265 = vpack.c.b16 %v228, %v227
    %v266 = vpack.c.b16 %v230, %v229
    %v267 = vpack.c.b16 %v232, %v231
    %v268 = vpack.c.b16 %v234, %v233
    %v269 = vpack.c.b16 %v236, %v235
    %v270 = vpack.c.b16 %v238, %v237
    %v275 = vunpack.c.l.b16 %v107
    %v276 = vunpack.c.l.b16 %v108
    %v277 = vunpack.c.l.b16 %v109
    %v278 = vunpack.c.l.b16 %v110
    %v279 = vpack.c.b16 %v276, %v275
    %v280 = vpack.c.b16 %v278, %v277
    %vm283 = vcmask 261120
    %v285 = vsel %vm283, %v239, 0
    %v288 = vsel %vm283, %v240, 0
    %v291 = vsel %vm283, %v241, 0
    %v294 = vsel %vm283, %v242, 0
    %v297 = vsel %vm283, %v243, 0
    %v300 = vsel %vm283, %v244, 0
    %v303 = vsel %vm283, %v245, 0
    %v306 = vsel %vm283, %v246, 0
    %v309 = vsel %vm283, %v247, 0
    %v312 = vsel %vm283, %v248, 0
    %v315 = vsel %vm283, %v249, 0
    %v318 = vsel %vm283, %v250, 0
    %v321 = vsel %vm283, %v251, 0
    %v324 = vsel %vm283, %v252, 0
    %v327 = vsel %vm283, %v253, 0
    %v330 = vsel %vm283, %v254, 0
    %v333 = vsel %vm283, %v255, 0
    %v336 = vsel %vm283, %v256, 0
    %v339 = vsel %vm283, %v257, 0
    %v342 = vsel %vm283, %v258, 0
    %v345 = vsel %vm283, %v259, 0
    %v348 = vsel %vm283, %v260, 0
    %v351 = vsel %vm283, %v261, 0
    %v354 = vsel %vm283, %v262, 0
    %v357 = vsel %vm283, %v263, 0
    %v360 = vsel %vm283, %v264, 0
    %v363 = vsel %vm283, %v265, 0
    %v366 = vsel %vm283, %v266, 0
    %v369 = vsel %vm283, %v267, 0
    %v372 = vsel %vm283, %v268, 0
    %v375 = vsel %vm283, %v269, 0
    %v378 = vsel %vm283, %v270, 0
    %380 = vmatprep.subr.bf16.mxu0 0
    %381 = vmatpush1.bf16.msra.mxu0 %v279
    %382 = vmatprep.subr.bf16.mxu0 0
    %383 = vmatpush1.bf16.msra.mxu0 %v280
    %384 = vmatprep.subr.bf16.mxu0 0
    %385 = vmatpush1.bf16.msra.mxu0 0
    %386 = vmatprep.subr.bf16.mxu0 0
    %387 = vmatpush1.bf16.msra.mxu0 0
    %388 = vmatprep.subr.bf16.mxu0 0
    %389 = vmatpush1.bf16.msra.mxu0 0
    %390 = vmatprep.subr.bf16.mxu0 0
    %391 = vmatpush1.bf16.msra.mxu0 0
    %392 = vmatprep.subr.bf16.mxu0 0
    %393 = vmatpush1.bf16.msra.mxu0 0
    %394 = vmatprep.subr.bf16.mxu0 0
    %395 = vmatpush1.bf16.msra.mxu0 0
    %396 = vmatprep.subr.bf16.mxu0 0
    %397 = vmatpush1.bf16.msra.mxu0 0
    %398 = vmatprep.subr.bf16.mxu0 0
    %399 = vmatpush1.bf16.msra.mxu0 0
    %400 = vmatprep.subr.bf16.mxu0 0
    %401 = vmatpush1.bf16.msra.mxu0 0
    %402 = vmatprep.subr.bf16.mxu0 0
    %403 = vmatpush1.bf16.msra.mxu0 0
    %404 = vmatprep.subr.bf16.mxu0 0
    %405 = vmatpush1.bf16.msra.mxu0 0
    %406 = vmatprep.subr.bf16.mxu0 0
    %407 = vmatpush1.bf16.msra.mxu0 0
    %408 = vmatprep.subr.bf16.mxu0 0
    %409 = vmatpush1.bf16.msra.mxu0 0
    %410 = vmatprep.subr.bf16.mxu0 0
    %411 = vmatpush1.bf16.msra.mxu0 0
    %412 = vmatprep.mubr.bf16.mxu0 0
    %413 = vmatmul.mubr.bf16.gmra.mrb[0].mxu0 %v285
    %v414 = vpop.f32.mrb[0].mxu0
    %v415 = vadd.f32 0.0, %v414
    %v416 = vpop.f32.mrb[0].mxu0
    %v417 = vpop.f32.mrb[0].mxu0
    %v418 = vadd.f32 0.0, %v417
    %v419 = vpop.f32.mrb[0].mxu0
    %420 = vmatprep.mubr.bf16.mxu0 0
    %421 = vmatmul.mubr.bf16.gmra.mrb[0].mxu0 %v288
    %v422 = vpop.f32.mrb[0].mxu0
    %v423 = vadd.f32 0.0, %v422
    %v424 = vpop.f32.mrb[0].mxu0
    %v425 = vpop.f32.mrb[0].mxu0
    %v426 = vadd.f32 0.0, %v425
    %v427 = vpop.f32.mrb[0].mxu0
    %428 = vmatprep.mubr.bf16.mxu0 0
    %429 = vmatmul.mubr.bf16.gmra.mrb[0].mxu0 %v291
    %v430 = vpop.f32.mrb[0].mxu0
    %v431 = vadd.f32 0.0, %v430
    %v432 = vpop.f32.mrb[0].mxu0
    %v433 = vpop.f32.mrb[0].mxu0
    %v434 = vadd.f32 0.0, %v433
    %v435 = vpop.f32.mrb[0].mxu0
    %436 = vmatprep.mubr.bf16.mxu0 0
    %437 = vmatmul.mubr.bf16.gmra.mrb[0].mxu0 %v294
    %v438 = vpop.f32.mrb[0].mxu0
    %v439 = vadd.f32 0.0, %v438
    %v440 = vpop.f32.mrb[0].mxu0
    %v441 = vpop.f32.mrb[0].mxu0
    %v442 = vadd.f32 0.0, %v441
    %v443 = vpop.f32.mrb[0].mxu0
    %444 = vmatprep.mubr.bf16.mxu0 0
    %445 = vmatmul.mubr.bf16.gmra.mrb[0].mxu0 %v297
    %v446 = vpop.f32.mrb[0].mxu0
    %v447 = vadd.f32 0.0, %v446
    %v448 = vpop.f32.mrb[0].mxu0
    %v449 = vpop.f32.mrb[0].mxu0
    %v450 = vadd.f32 0.0, %v449
    %v451 = vpop.f32.mrb[0].mxu0
    %452 = vmatprep.mubr.bf16.mxu0 0
    %453 = vmatmul.mubr.bf16.gmra.mrb[0].mxu0 %v300
    %v454 = vpop.f32.mrb[0].mxu0
    %v455 = vadd.f32 0.0, %v454
    %v456 = vpop.f32.mrb[0].mxu0
    %v457 = vpop.f32.mrb[0].mxu0
    %v458 = vadd.f32 0.0, %v457
    %v459 = vpop.f32.mrb[0].mxu0
    %460 = vmatprep.mubr.bf16.mxu0 0
    %461 = vmatmul.mubr.bf16.gmra.mrb[0].mxu0 %v303
    %v462 = vpop.f32.mrb[0].mxu0
    %v463 = vadd.f32 0.0, %v462
    %v464 = vpop.f32.mrb[0].mxu0
    %v465 = vpop.f32.mrb[0].mxu0
    %v466 = vadd.f32 0.0, %v465
    %v467 = vpop.f32.mrb[0].mxu0
    %468 = vmatprep.mubr.bf16.mxu0 0
    %469 = vmatmul.mubr.bf16.gmra.mrb[0].mxu0 %v306
    %v470 = vpop.f32.mrb[0].mxu0
    %v471 = vadd.f32 0.0, %v470
    %v472 = vpop.f32.mrb[0].mxu0
    %v473 = vpop.f32.mrb[0].mxu0
    %v474 = vadd.f32 0.0, %v473
    %v475 = vpop.f32.mrb[0].mxu0
    %476 = vmatprep.mubr.bf16.mxu0 0
    %477 = vmatmul.mubr.bf16.gmra.mrb[0].mxu0 %v309
    %v478 = vpop.f32.mrb[0].mxu0
    %v479 = vadd.f32 0.0, %v478
    %v480 = vpop.f32.mrb[0].mxu0
    %v481 = vpop.f32.mrb[0].mxu0
    %v482 = vadd.f32 0.0, %v481
    %v483 = vpop.f32.mrb[0].mxu0
    %484 = vmatprep.mubr.bf16.mxu0 0
    %485 = vmatmul.mubr.bf16.gmra.mrb[0].mxu0 %v312
    %v486 = vpop.f32.mrb[0].mxu0
    %v487 = vadd.f32 0.0, %v486
    %v488 = vpop.f32.mrb[0].mxu0
    %v489 = vpop.f32.mrb[0].mxu0
    %v490 = vadd.f32 0.0, %v489
    %v491 = vpop.f32.mrb[0].mxu0
    %492 = vmatprep.mubr.bf16.mxu0 0
    %493 = vmatmul.mubr.bf16.gmra.mrb[0].mxu0 %v315
    %v494 = vpop.f32.mrb[0].mxu0
    %v495 = vadd.f32 0.0, %v494
    %v496 = vpop.f32.mrb[0].mxu0
    %v497 = vpop.f32.mrb[0].mxu0
    %v498 = vadd.f32 0.0, %v497
    %v499 = vpop.f32.mrb[0].mxu0
    %500 = vmatprep.mubr.bf16.mxu0 0
    %501 = vmatmul.mubr.bf16.gmra.mrb[0].mxu0 %v318
    %v502 = vpop.f32.mrb[0].mxu0
    %v503 = vadd.f32 0.0, %v502
    %v504 = vpop.f32.mrb[0].mxu0
    %v505 = vpop.f32.mrb[0].mxu0
    %v506 = vadd.f32 0.0, %v505
    %v507 = vpop.f32.mrb[0].mxu0
    %508 = vmatprep.mubr.bf16.mxu0 0
    %509 = vmatmul.mubr.bf16.gmra.mrb[0].mxu0 %v321
    %v510 = vpop.f32.mrb[0].mxu0
    %v511 = vadd.f32 0.0, %v510
    %v512 = vpop.f32.mrb[0].mxu0
    %v513 = vpop.f32.mrb[0].mxu0
    %v514 = vadd.f32 0.0, %v513
    %v515 = vpop.f32.mrb[0].mxu0
    %516 = vmatprep.mubr.bf16.mxu0 0
    %517 = vmatmul.mubr.bf16.gmra.mrb[0].mxu0 %v324
    %v518 = vpop.f32.mrb[0].mxu0
    %v519 = vadd.f32 0.0, %v518
    %v520 = vpop.f32.mrb[0].mxu0
    %v521 = vpop.f32.mrb[0].mxu0
    %v522 = vadd.f32 0.0, %v521
    %v523 = vpop.f32.mrb[0].mxu0
    %524 = vmatprep.mubr.bf16.mxu0 0
    %525 = vmatmul.mubr.bf16.gmra.mrb[0].mxu0 %v327
    %v526 = vpop.f32.mrb[0].mxu0
    %v527 = vadd.f32 0.0, %v526
    %v528 = vpop.f32.mrb[0].mxu0
    %v529 = vpop.f32.mrb[0].mxu0
    %v530 = vadd.f32 0.0, %v529
    %v531 = vpop.f32.mrb[0].mxu0
    %532 = vmatprep.mubr.bf16.mxu0 0
    %533 = vmatmul.mubr.bf16.gmra.mrb[0].mxu0 %v330
    %v534 = vpop.f32.mrb[0].mxu0
    %v535 = vadd.f32 0.0, %v534
    %v536 = vpop.f32.mrb[0].mxu0
    %v537 = vpop.f32.mrb[0].mxu0
    %v538 = vadd.f32 0.0, %v537
    %v539 = vpop.f32.mrb[0].mxu0
    %540 = vmatprep.mubr.bf16.mxu0 0
    %541 = vmatmul.mubr.bf16.gmra.mrb[0].mxu0 %v333
    %v542 = vpop.f32.mrb[0].mxu0
    %v543 = vadd.f32 0.0, %v542
    %v544 = vpop.f32.mrb[0].mxu0
    %v545 = vpop.f32.mrb[0].mxu0
    %v546 = vadd.f32 0.0, %v545
    %v547 = vpop.f32.mrb[0].mxu0
    %548 = vmatprep.mubr.bf16.mxu0 0
    %549 = vmatmul.mubr.bf16.gmra.mrb[0].mxu0 %v336
    %v550 = vpop.f32.mrb[0].mxu0
    %v551 = vadd.f32 0.0, %v550
    %v552 = vpop.f32.mrb[0].mxu0
    %v553 = vpop.f32.mrb[0].mxu0
    %v554 = vadd.f32 0.0, %v553
    %v555 = vpop.f32.mrb[0].mxu0
    %556 = vmatprep.mubr.bf16.mxu0 0
    %557 = vmatmul.mubr.bf16.gmra.mrb[0].mxu0 %v339
    %v558 = vpop.f32.mrb[0].mxu0
    %v559 = vadd.f32 0.0, %v558
    %v560 = vpop.f32.mrb[0].mxu0
    %v561 = vpop.f32.mrb[0].mxu0
    %v562 = vadd.f32 0.0, %v561
    %v563 = vpop.f32.mrb[0].mxu0
    %564 = vmatprep.mubr.bf16.mxu0 0
    %565 = vmatmul.mubr.bf16.gmra.mrb[0].mxu0 %v342
    %v566 = vpop.f32.mrb[0].mxu0
    %v567 = vadd.f32 0.0, %v566
    %v568 = vpop.f32.mrb[0].mxu0
    %v569 = vpop.f32.mrb[0].mxu0
    %v570 = vadd.f32 0.0, %v569
    %v571 = vpop.f32.mrb[0].mxu0
    %572 = vmatprep.mubr.bf16.mxu0 0
    %573 = vmatmul.mubr.bf16.gmra.mrb[0].mxu0 %v345
    %v574 = vpop.f32.mrb[0].mxu0
    %v575 = vadd.f32 0.0, %v574
    %v576 = vpop.f32.mrb[0].mxu0
    %v577 = vpop.f32.mrb[0].mxu0
    %v578 = vadd.f32 0.0, %v577
    %v579 = vpop.f32.mrb[0].mxu0
    %580 = vmatprep.mubr.bf16.mxu0 0
    %581 = vmatmul.mubr.bf16.gmra.mrb[0].mxu0 %v348
    %v582 = vpop.f32.mrb[0].mxu0
    %v583 = vadd.f32 0.0, %v582
    %v584 = vpop.f32.mrb[0].mxu0
    %v585 = vpop.f32.mrb[0].mxu0
    %v586 = vadd.f32 0.0, %v585
    %v587 = vpop.f32.mrb[0].mxu0
    %588 = vmatprep.mubr.bf16.mxu0 0
    %589 = vmatmul.mubr.bf16.gmra.mrb[0].mxu0 %v351
    %v590 = vpop.f32.mrb[0].mxu0
    %v591 = vadd.f32 0.0, %v590
    %v592 = vpop.f32.mrb[0].mxu0
    %v593 = vpop.f32.mrb[0].mxu0
    %v594 = vadd.f32 0.0, %v593
    %v595 = vpop.f32.mrb[0].mxu0
    %596 = vmatprep.mubr.bf16.mxu0 0
    %597 = vmatmul.mubr.bf16.gmra.mrb[0].mxu0 %v354
    %v598 = vpop.f32.mrb[0].mxu0
    %v599 = vadd.f32 0.0, %v598
    %v600 = vpop.f32.mrb[0].mxu0
    %v601 = vpop.f32.mrb[0].mxu0
    %v602 = vadd.f32 0.0, %v601
    %v603 = vpop.f32.mrb[0].mxu0
    %604 = vmatprep.mubr.bf16.mxu0 0
    %605 = vmatmul.mubr.bf16.gmra.mrb[0].mxu0 %v357
    %v606 = vpop.f32.mrb[0].mxu0
    %v607 = vadd.f32 0.0, %v606
    %v608 = vpop.f32.mrb[0].mxu0
    %v609 = vpop.f32.mrb[0].mxu0
    %v610 = vadd.f32 0.0, %v609
    %v611 = vpop.f32.mrb[0].mxu0
    %612 = vmatprep.mubr.bf16.mxu0 0
    %613 = vmatmul.mubr.bf16.gmra.mrb[0].mxu0 %v360
    %v614 = vpop.f32.mrb[0].mxu0
    %v615 = vadd.f32 0.0, %v614
    %v616 = vpop.f32.mrb[0].mxu0
    %v617 = vpop.f32.mrb[0].mxu0
    %v618 = vadd.f32 0.0, %v617
    %v619 = vpop.f32.mrb[0].mxu0
    %620 = vmatprep.mubr.bf16.mxu0 0
    %621 = vmatmul.mubr.bf16.gmra.mrb[0].mxu0 %v363
    %v622 = vpop.f32.mrb[0].mxu0
    %v623 = vadd.f32 0.0, %v622
    %v624 = vpop.f32.mrb[0].mxu0
    %v625 = vpop.f32.mrb[0].mxu0
    %v626 = vadd.f32 0.0, %v625
    %v627 = vpop.f32.mrb[0].mxu0
    %628 = vmatprep.mubr.bf16.mxu0 0
    %629 = vmatmul.mubr.bf16.gmra.mrb[0].mxu0 %v366
    %v630 = vpop.f32.mrb[0].mxu0
    %v631 = vadd.f32 0.0, %v630
    %v632 = vpop.f32.mrb[0].mxu0
    %v633 = vpop.f32.mrb[0].mxu0
    %v634 = vadd.f32 0.0, %v633
    %v635 = vpop.f32.mrb[0].mxu0
    %636 = vmatprep.mubr.bf16.mxu0 0
    %637 = vmatmul.mubr.bf16.gmra.mrb[0].mxu0 %v369
    %v638 = vpop.f32.mrb[0].mxu0
    %v639 = vadd.f32 0.0, %v638
    %v640 = vpop.f32.mrb[0].mxu0
    %v641 = vpop.f32.mrb[0].mxu0
    %v642 = vadd.f32 0.0, %v641
    %v643 = vpop.f32.mrb[0].mxu0
    %644 = vmatprep.mubr.bf16.mxu0 0
    %645 = vmatmul.mubr.bf16.gmra.mrb[0].mxu0 %v372
    %v646 = vpop.f32.mrb[0].mxu0
    %v647 = vadd.f32 0.0, %v646
    %v648 = vpop.f32.mrb[0].mxu0
    %v649 = vpop.f32.mrb[0].mxu0
    %v650 = vadd.f32 0.0, %v649
    %v651 = vpop.f32.mrb[0].mxu0
    %652 = vmatprep.mubr.bf16.mxu0 0
    %653 = vmatmul.mubr.bf16.gmra.mrb[0].mxu0 %v375
    %v654 = vpop.f32.mrb[0].mxu0
    %v655 = vadd.f32 0.0, %v654
    %v656 = vpop.f32.mrb[0].mxu0
    %v657 = vpop.f32.mrb[0].mxu0
    %v658 = vadd.f32 0.0, %v657
    %v659 = vpop.f32.mrb[0].mxu0
    %660 = vmatprep.mubr.bf16.mxu0 0
    %661 = vmatmul.mubr.bf16.gmra.mrb[0].mxu0 %v378
    %v662 = vpop.f32.mrb[0].mxu0
    %v663 = vadd.f32 0.0, %v662
    %v664 = vpop.f32.mrb[0].mxu0
    %v665 = vpop.f32.mrb[0].mxu0
    %v666 = vadd.f32 0.0, %v665
    %v667 = vpop.f32.mrb[0].mxu0
    %668 = vdwg.mxu0
    %v669 = vld [vmem:[%s3] sm:$0x1]
    %v671 = vlaneseq
    %v672 = vshrl.u32 %v671, 7
    %v673 = vsub.s32 0, %v672
    %v674 = vrot.slane %v669, %v673
    %v676 = vmul.f32 %v415, %v674
    %v677 = vmul.f32 %v418, %v674
    %v678 = vmul.f32 %v423, %v674
    %v679 = vmul.f32 %v426, %v674
    %v680 = vmul.f32 %v431, %v674
    %v681 = vmul.f32 %v434, %v674
    %v682 = vmul.f32 %v439, %v674
    %v683 = vmul.f32 %v442, %v674
    %v684 = vmul.f32 %v447, %v674
    %v685 = vmul.f32 %v450, %v674
    %v686 = vmul.f32 %v455, %v674
    %v687 = vmul.f32 %v458, %v674
    %v688 = vmul.f32 %v463, %v674
    %v689 = vmul.f32 %v466, %v674
    %v690 = vmul.f32 %v471, %v674
    %v691 = vmul.f32 %v474, %v674
    %v692 = vmul.f32 %v479, %v674
    %v693 = vmul.f32 %v482, %v674
    %v694 = vmul.f32 %v487, %v674
    %v695 = vmul.f32 %v490, %v674
    %v696 = vmul.f32 %v495, %v674
    %v697 = vmul.f32 %v498, %v674
    %v698 = vmul.f32 %v503, %v674
    %v699 = vmul.f32 %v506, %v674
    %v700 = vmul.f32 %v511, %v674
    %v701 = vmul.f32 %v514, %v674
    %v702 = vmul.f32 %v519, %v674
    %v703 = vmul.f32 %v522, %v674
    %v704 = vmul.f32 %v527, %v674
    %v705 = vmul.f32 %v530, %v674
    %v706 = vmul.f32 %v535, %v674
    %v707 = vmul.f32 %v538, %v674
    %v708 = vmul.f32 %v543, %v674
    %v709 = vmul.f32 %v546, %v674
    %v710 = vmul.f32 %v551, %v674
    %v711 = vmul.f32 %v554, %v674
    %v712 = vmul.f32 %v559, %v674
    %v713 = vmul.f32 %v562, %v674
    %v714 = vmul.f32 %v567, %v674
    %v715 = vmul.f32 %v570, %v674
    %v716 = vmul.f32 %v575, %v674
    %v717 = vmul.f32 %v578, %v674
    %v718 = vmul.f32 %v583, %v674
    %v719 = vmul.f32 %v586, %v674
    %v720 = vmul.f32 %v591, %v674
    %v721 = vmul.f32 %v594, %v674
    %v722 = vmul.f32 %v599, %v674
    %v723 = vmul.f32 %v602, %v674
    %v724 = vmul.f32 %v607, %v674
    %v725 = vmul.f32 %v610, %v674
    %v726 = vmul.f32 %v615, %v674
    %v727 = vmul.f32 %v618, %v674
    %v728 = vmul.f32 %v623, %v674
    %v729 = vmul.f32 %v626, %v674
    %v730 = vmul.f32 %v631, %v674
    %v731 = vmul.f32 %v634, %v674
    %v732 = vmul.f32 %v639, %v674
    %v733 = vmul.f32 %v642, %v674
    %v734 = vmul.f32 %v647, %v674
    %v735 = vmul.f32 %v650, %v674
    %v736 = vmul.f32 %v655, %v674
    %v737 = vmul.f32 %v658, %v674
    %v738 = vmul.f32 %v663, %v674
    %v739 = vmul.f32 %v666, %v674
    %v740 = vld [vmem:[%s4] sm:$0x1]
    %v742 = vlaneseq
    %v743 = vshrl.u32 %v742, 7
    %v744 = vsub.s32 0, %v743
    %v745 = vrot.slane %v740, %v744
    %v747 = vadd.f32 %v676, %v745
    %v748 = vadd.f32 %v677, %v745
    %v749 = vadd.f32 %v678, %v745
    %v750 = vadd.f32 %v679, %v745
    %v751 = vadd.f32 %v680, %v745
    %v752 = vadd.f32 %v681, %v745
    %v753 = vadd.f32 %v682, %v745
    %v754 = vadd.f32 %v683, %v745
    %v755 = vadd.f32 %v684, %v745
    %v756 = vadd.f32 %v685, %v745
    %v757 = vadd.f32 %v686, %v745
    %v758 = vadd.f32 %v687, %v745
    %v759 = vadd.f32 %v688, %v745
    %v760 = vadd.f32 %v689, %v745
    %v761 = vadd.f32 %v690, %v745
    %v762 = vadd.f32 %v691, %v745
    %v763 = vadd.f32 %v692, %v745
    %v764 = vadd.f32 %v693, %v745
    %v765 = vadd.f32 %v694, %v745
    %v766 = vadd.f32 %v695, %v745
    %v767 = vadd.f32 %v696, %v745
    %v768 = vadd.f32 %v697, %v745
    %v769 = vadd.f32 %v698, %v745
    %v770 = vadd.f32 %v699, %v745
    %v771 = vadd.f32 %v700, %v745
    %v772 = vadd.f32 %v701, %v745
    %v773 = vadd.f32 %v702, %v745
    %v774 = vadd.f32 %v703, %v745
    %v775 = vadd.f32 %v704, %v745
    %v776 = vadd.f32 %v705, %v745
    %v777 = vadd.f32 %v706, %v745
    %v778 = vadd.f32 %v707, %v745
    %v779 = vadd.f32 %v708, %v745
    %v780 = vadd.f32 %v709, %v745
    %v781 = vadd.f32 %v710, %v745
    %v782 = vadd.f32 %v711, %v745
    %v783 = vadd.f32 %v712, %v745
    %v784 = vadd.f32 %v713, %v745
    %v785 = vadd.f32 %v714, %v745
    %v786 = vadd.f32 %v715, %v745
    %v787 = vadd.f32 %v716, %v745
    %v788 = vadd.f32 %v717, %v745
    %v789 = vadd.f32 %v718, %v745
    %v790 = vadd.f32 %v719, %v745
    %v791 = vadd.f32 %v720, %v745
    %v792 = vadd.f32 %v721, %v745
    %v793 = vadd.f32 %v722, %v745
    %v794 = vadd.f32 %v723, %v745
    %v795 = vadd.f32 %v724, %v745
    %v796 = vadd.f32 %v725, %v745
    %v797 = vadd.f32 %v726, %v745
    %v798 = vadd.f32 %v727, %v745
    %v799 = vadd.f32 %v728, %v745
    %v800 = vadd.f32 %v729, %v745
    %v801 = vadd.f32 %v730, %v745
    %v802 = vadd.f32 %v731, %v745
    %v803 = vadd.f32 %v732, %v745
    %v804 = vadd.f32 %v733, %v745
    %v805 = vadd.f32 %v734, %v745
    %v806 = vadd.f32 %v735, %v745
    %v807 = vadd.f32 %v736, %v745
    %v808 = vadd.f32 %v737, %v745
    %v809 = vadd.f32 %v738, %v745
    %v810 = vadd.f32 %v739, %v745
    %v811 = vmax.f32 %v747, 0.0
    %v812 = vmax.f32 %v748, 0.0
    %v813 = vmax.f32 %v749, 0.0
    %v814 = vmax.f32 %v750, 0.0
    %v815 = vmax.f32 %v751, 0.0
    %v816 = vmax.f32 %v752, 0.0
    %v817 = vmax.f32 %v753, 0.0
    %v818 = vmax.f32 %v754, 0.0
    %v819 = vmax.f32 %v755, 0.0
    %v820 = vmax.f32 %v756, 0.0
    %v821 = vmax.f32 %v757, 0.0
    %v822 = vmax.f32 %v758, 0.0
    %v823 = vmax.f32 %v759, 0.0
    %v824 = vmax.f32 %v760, 0.0
    %v825 = vmax.f32 %v761, 0.0
    %v826 = vmax.f32 %v762, 0.0
    %v827 = vmax.f32 %v763, 0.0
    %v828 = vmax.f32 %v764, 0.0
    %v829 = vmax.f32 %v765, 0.0
    %v830 = vmax.f32 %v766, 0.0
    %v831 = vmax.f32 %v767, 0.0
    %v832 = vmax.f32 %v768, 0.0
    %v833 = vmax.f32 %v769, 0.0
    %v834 = vmax.f32 %v770, 0.0
    %v835 = vmax.f32 %v771, 0.0
    %v836 = vmax.f32 %v772, 0.0
    %v837 = vmax.f32 %v773, 0.0
    %v838 = vmax.f32 %v774, 0.0
    %v839 = vmax.f32 %v775, 0.0
    %v840 = vmax.f32 %v776, 0.0
    %v841 = vmax.f32 %v777, 0.0
    %v842 = vmax.f32 %v778, 0.0
    %v843 = vmax.f32 %v779, 0.0
    %v844 = vmax.f32 %v780, 0.0
    %v845 = vmax.f32 %v781, 0.0
    %v846 = vmax.f32 %v782, 0.0
    %v847 = vmax.f32 %v783, 0.0
    %v848 = vmax.f32 %v784, 0.0
    %v849 = vmax.f32 %v785, 0.0
    %v850 = vmax.f32 %v786, 0.0
    %v851 = vmax.f32 %v787, 0.0
    %v852 = vmax.f32 %v788, 0.0
    %v853 = vmax.f32 %v789, 0.0
    %v854 = vmax.f32 %v790, 0.0
    %v855 = vmax.f32 %v791, 0.0
    %v856 = vmax.f32 %v792, 0.0
    %v857 = vmax.f32 %v793, 0.0
    %v858 = vmax.f32 %v794, 0.0
    %v859 = vmax.f32 %v795, 0.0
    %v860 = vmax.f32 %v796, 0.0
    %v861 = vmax.f32 %v797, 0.0
    %v862 = vmax.f32 %v798, 0.0
    %v863 = vmax.f32 %v799, 0.0
    %v864 = vmax.f32 %v800, 0.0
    %v865 = vmax.f32 %v801, 0.0
    %v866 = vmax.f32 %v802, 0.0
    %v867 = vmax.f32 %v803, 0.0
    %v868 = vmax.f32 %v804, 0.0
    %v869 = vmax.f32 %v805, 0.0
    %v870 = vmax.f32 %v806, 0.0
    %v871 = vmax.f32 %v807, 0.0
    %v872 = vmax.f32 %v808, 0.0
    %v873 = vmax.f32 %v809, 0.0
    %v874 = vmax.f32 %v810, 0.0
    %v875 = vld [vmem:[%s0] sm:$0xf]
    %v876 = vld [vmem:[%s0 + $0x4] sm:$0xf]
    %v877 = vld [vmem:[%s0 + $0x8] sm:$0xf]
    %v878 = vld [vmem:[%s0 + $0xc] sm:$0xf]
    %v879 = vld [vmem:[%s0 + $0x10] sm:$0xf]
    %v880 = vld [vmem:[%s0 + $0x14] sm:$0xf]
    %v881 = vld [vmem:[%s0 + $0x18] sm:$0xf]
    %v882 = vld [vmem:[%s0 + $0x1c] sm:$0xf]
    %v883 = vld [vmem:[%s0 + $0x20] sm:$0xf]
    %v884 = vld [vmem:[%s0 + $0x24] sm:$0xf]
    %v885 = vld [vmem:[%s0 + $0x28] sm:$0xf]
    %v886 = vld [vmem:[%s0 + $0x2c] sm:$0xf]
    %v887 = vld [vmem:[%s0 + $0x30] sm:$0xf]
    %v888 = vld [vmem:[%s0 + $0x34] sm:$0xf]
    %v889 = vld [vmem:[%s0 + $0x38] sm:$0xf]
    %v890 = vld [vmem:[%s0 + $0x3c] sm:$0xf]
    %v891 = vld [vmem:[%s0 + $0x40] sm:$0xf]
    %v892 = vld [vmem:[%s0 + $0x44] sm:$0xf]
    %v893 = vld [vmem:[%s0 + $0x48] sm:$0xf]
    %v894 = vld [vmem:[%s0 + $0x4c] sm:$0xf]
    %v895 = vld [vmem:[%s0 + $0x50] sm:$0xf]
    %v896 = vld [vmem:[%s0 + $0x54] sm:$0xf]
    %v897 = vld [vmem:[%s0 + $0x58] sm:$0xf]
    %v898 = vld [vmem:[%s0 + $0x5c] sm:$0xf]
    %v899 = vld [vmem:[%s0 + $0x60] sm:$0xf]
    %v900 = vld [vmem:[%s0 + $0x64] sm:$0xf]
    %v901 = vld [vmem:[%s0 + $0x68] sm:$0xf]
    %v902 = vld [vmem:[%s0 + $0x6c] sm:$0xf]
    %v903 = vld [vmem:[%s0 + $0x70] sm:$0xf]
    %v904 = vld [vmem:[%s0 + $0x74] sm:$0xf]
    %v905 = vld [vmem:[%s0 + $0x78] sm:$0xf]
    %v906 = vld [vmem:[%s0 + $0x7c] sm:$0xf]
    %v907 = vld [vmem:[%s0 + $0x80] sm:$0xf]
    %v908 = vld [vmem:[%s0 + $0x84] sm:$0xf]
    %v909 = vld [vmem:[%s0 + $0x88] sm:$0xf]
    %v910 = vld [vmem:[%s0 + $0x8c] sm:$0xf]
    %v911 = vld [vmem:[%s0 + $0x90] sm:$0xf]
    %v912 = vld [vmem:[%s0 + $0x94] sm:$0xf]
    %v913 = vld [vmem:[%s0 + $0x98] sm:$0xf]
    %v914 = vld [vmem:[%s0 + $0x9c] sm:$0xf]
    %v915 = vld [vmem:[%s0 + $0xa0] sm:$0xf]
    %v916 = vld [vmem:[%s0 + $0xa4] sm:$0xf]
    %v917 = vld [vmem:[%s0 + $0xa8] sm:$0xf]
    %v918 = vld [vmem:[%s0 + $0xac] sm:$0xf]
    %v919 = vld [vmem:[%s0 + $0xb0] sm:$0xf]
    %v920 = vld [vmem:[%s0 + $0xb4] sm:$0xf]
    %v921 = vld [vmem:[%s0 + $0xb8] sm:$0xf]
    %v922 = vld [vmem:[%s0 + $0xbc] sm:$0xf]
    %v923 = vld [vmem:[%s0 + $0xc0] sm:$0xf]
    %v924 = vld [vmem:[%s0 + $0xc4] sm:$0xf]
    %v925 = vld [vmem:[%s0 + $0xc8] sm:$0xf]
    %v926 = vld [vmem:[%s0 + $0xcc] sm:$0xf]
    %v927 = vld [vmem:[%s0 + $0xd0] sm:$0xf]
    %v928 = vld [vmem:[%s0 + $0xd4] sm:$0xf]
    %v929 = vld [vmem:[%s0 + $0xd8] sm:$0xf]
    %v930 = vld [vmem:[%s0 + $0xdc] sm:$0xf]
    %v931 = vld [vmem:[%s0 + $0xe0] sm:$0xf]
    %v932 = vld [vmem:[%s0 + $0xe4] sm:$0xf]
    %v933 = vld [vmem:[%s0 + $0xe8] sm:$0xf]
    %v934 = vld [vmem:[%s0 + $0xec] sm:$0xf]
    %v935 = vld [vmem:[%s0 + $0xf0] sm:$0xf]
    %v936 = vld [vmem:[%s0 + $0xf4] sm:$0xf]
    %v937 = vld [vmem:[%s0 + $0xf8] sm:$0xf]
    %v938 = vld [vmem:[%s0 + $0xfc] sm:$0xf]
    %v939 = vld [vmem:[%s5] sm:$0xf]
    %v940 = vld [vmem:[%s5 + $0x4] sm:$0xf]
    %v941 = vld [vmem:[%s5 + $0x8] sm:$0xf]
    %v942 = vld [vmem:[%s5 + $0xc] sm:$0xf]
    %v943 = vpack.c.bf16 %v812, %v811
    %v944 = vpack.c.bf16 %v814, %v813
    %v945 = vpack.c.bf16 %v816, %v815
    %v946 = vpack.c.bf16 %v818, %v817
    %v947 = vpack.c.bf16 %v820, %v819
    %v948 = vpack.c.bf16 %v822, %v821
    %v949 = vpack.c.bf16 %v824, %v823
    %v950 = vpack.c.bf16 %v826, %v825
    %v951 = vpack.c.bf16 %v828, %v827
    %v952 = vpack.c.bf16 %v830, %v829
    %v953 = vpack.c.bf16 %v832, %v831
    %v954 = vpack.c.bf16 %v834, %v833
    %v955 = vpack.c.bf16 %v836, %v835
    %v956 = vpack.c.bf16 %v838, %v837
    %v957 = vpack.c.bf16 %v840, %v839
    %v958 = vpack.c.bf16 %v842, %v841
    %v959 = vpack.c.bf16 %v844, %v843
    %v960 = vpack.c.bf16 %v846, %v845
    %v961 = vpack.c.bf16 %v848, %v847
    %v962 = vpack.c.bf16 %v850, %v849
    %v963 = vpack.c.bf16 %v852, %v851
    %v964 = vpack.c.bf16 %v854, %v853
    %v965 = vpack.c.bf16 %v856, %v855
    %v966 = vpack.c.bf16 %v858, %v857
    %v967 = vpack.c.bf16 %v860, %v859
    %v968 = vpack.c.bf16 %v862, %v861
    %v969 = vpack.c.bf16 %v864, %v863
    %v970 = vpack.c.bf16 %v866, %v865
    %v971 = vpack.c.bf16 %v868, %v867
    %v972 = vpack.c.bf16 %v870, %v869
    %v973 = vpack.c.bf16 %v872, %v871
    %v974 = vpack.c.bf16 %v874, %v873
    %v975 = vld [vmem:[%s6] sm:$0xf]
    %v976 = vld [vmem:[%s6 + $0x4] sm:$0xf]
    %v977 = vld [vmem:[%s6 + $0x8] sm:$0xf]
    %v978 = vld [vmem:[%s6 + $0xc] sm:$0xf]
    %v979 = vld [vmem:[%s6 + $0x10] sm:$0xf]
    %v980 = vld [vmem:[%s6 + $0x14] sm:$0xf]
    %v981 = vld [vmem:[%s6 + $0x18] sm:$0xf]
    %v982 = vld [vmem:[%s6 + $0x1c] sm:$0xf]
    %v983 = vld [vmem:[%s6 + $0x20] sm:$0xf]
    %v984 = vld [vmem:[%s6 + $0x24] sm:$0xf]
    %v985 = vld [vmem:[%s6 + $0x28] sm:$0xf]
    %v986 = vld [vmem:[%s6 + $0x2c] sm:$0xf]
    %v987 = vld [vmem:[%s6 + $0x30] sm:$0xf]
    %v988 = vld [vmem:[%s6 + $0x34] sm:$0xf]
    %v989 = vld [vmem:[%s6 + $0x38] sm:$0xf]
    %v990 = vld [vmem:[%s6 + $0x3c] sm:$0xf]
    %v1007 = vunpack.c.l.b16 %v975
    %v1008 = vunpack.c.l.b16 %v976
    %v1009 = vunpack.c.l.b16 %v977
    %v1010 = vunpack.c.l.b16 %v978
    %v1011 = vunpack.c.l.b16 %v979
    %v1012 = vunpack.c.l.b16 %v980
    %v1013 = vunpack.c.l.b16 %v981
    %v1014 = vunpack.c.l.b16 %v982
    %v1015 = vunpack.c.l.b16 %v983
    %v1016 = vunpack.c.l.b16 %v984
    %v1017 = vunpack.c.l.b16 %v985
    %v1018 = vunpack.c.l.b16 %v986
    %v1019 = vunpack.c.l.b16 %v987
    %v1020 = vunpack.c.l.b16 %v988
    %v1021 = vunpack.c.l.b16 %v989
    %v1022 = vunpack.c.l.b16 %v990
    %v1023 = vpack.c.b16 %v1008, %v1007
    %v1024 = vpack.c.b16 %v1010, %v1009
    %v1025 = vpack.c.b16 %v1012, %v1011
    %v1026 = vpack.c.b16 %v1014, %v1013
    %v1027 = vpack.c.b16 %v1016, %v1015
    %v1028 = vpack.c.b16 %v1018, %v1017
    %v1029 = vpack.c.b16 %v1020, %v1019
    %v1030 = vpack.c.b16 %v1022, %v1021
    %1039 = vmatprep.subr.bf16.mxu0 0
    %1040 = vmatpush1.bf16.msra.mxu0 %v1023
    %1041 = vmatprep.subr.bf16.mxu0 0
    %1042 = vmatpush1.bf16.msra.mxu0 %v1024
    %1043 = vmatprep.subr.bf16.mxu0 0
    %1044 = vmatpush1.bf16.msra.mxu0 %v1025
    %1045 = vmatprep.subr.bf16.mxu0 0
    %1046 = vmatpush1.bf16.msra.mxu0 %v1026
    %1047 = vmatprep.subr.bf16.mxu0 0
    %1048 = vmatpush1.bf16.msra.mxu0 %v1027
    %1049 = vmatprep.subr.bf16.mxu0 0
    %1050 = vmatpush1.bf16.msra.mxu0 %v1028
    %1051 = vmatprep.subr.bf16.mxu0 0
    %1052 = vmatpush1.bf16.msra.mxu0 %v1029
    %1053 = vmatprep.subr.bf16.mxu0 0
    %1054 = vmatpush1.bf16.msra.mxu0 %v1030
    %1055 = vmatprep.subr.bf16.mxu0 0
    %1056 = vmatpush1.bf16.msra.mxu0 0
    %1057 = vmatprep.subr.bf16.mxu0 0
    %1058 = vmatpush1.bf16.msra.mxu0 0
    %1059 = vmatprep.subr.bf16.mxu0 0
    %1060 = vmatpush1.bf16.msra.mxu0 0
    %1061 = vmatprep.subr.bf16.mxu0 0
    %1062 = vmatpush1.bf16.msra.mxu0 0
    %1063 = vmatprep.subr.bf16.mxu0 0
    %1064 = vmatpush1.bf16.msra.mxu0 0
    %1065 = vmatprep.subr.bf16.mxu0 0
    %1066 = vmatpush1.bf16.msra.mxu0 0
    %1067 = vmatprep.subr.bf16.mxu0 0
    %1068 = vmatpush1.bf16.msra.mxu0 0
    %1069 = vmatprep.subr.bf16.mxu0 0
    %1070 = vmatpush1.bf16.msra.mxu0 0
    %1071 = vmatprep.mubr.bf16.mxu0 0
    %1072 = vmatmul.mubr.bf16.gmra.mrb[0].mxu0 %v943
    %v1073 = vpop.f32.mrb[0].mxu0
    %v1074 = vadd.f32 0.0, %v1073
    %v1075 = vpop.f32.mrb[0].mxu0
    %v1076 = vpop.f32.mrb[0].mxu0
    %v1077 = vadd.f32 0.0, %v1076
    %v1078 = vpop.f32.mrb[0].mxu0
    %1079 = vmatprep.mubr.bf16.mxu0 0
    %1080 = vmatmul.mubr.bf16.gmra.mrb[0].mxu0 %v944
    %v1081 = vpop.f32.mrb[0].mxu0
    %v1082 = vadd.f32 0.0, %v1081
    %v1083 = vpop.f32.mrb[0].mxu0
    %v1084 = vpop.f32.mrb[0].mxu0
    %v1085 = vadd.f32 0.0, %v1084
    %v1086 = vpop.f32.mrb[0].mxu0
    %1087 = vmatprep.mubr.bf16.mxu0 0
    %1088 = vmatmul.mubr.bf16.gmra.mrb[0].mxu0 %v945
    %v1089 = vpop.f32.mrb[0].mxu0
    %v1090 = vadd.f32 0.0, %v1089
    %v1091 = vpop.f32.mrb[0].mxu0
    %v1092 = vpop.f32.mrb[0].mxu0
    %v1093 = vadd.f32 0.0, %v1092
    %v1094 = vpop.f32.mrb[0].mxu0
    %1095 = vmatprep.mubr.bf16.mxu0 0
    %1096 = vmatmul.mubr.bf16.gmra.mrb[0].mxu0 %v946
    %v1097 = vpop.f32.mrb[0].mxu0
    %v1098 = vadd.f32 0.0, %v1097
    %v1099 = vpop.f32.mrb[0].mxu0
    %v1100 = vpop.f32.mrb[0].mxu0
    %v1101 = vadd.f32 0.0, %v1100
    %v1102 = vpop.f32.mrb[0].mxu0
    %1103 = vmatprep.mubr.bf16.mxu0 0
    %1104 = vmatmul.mubr.bf16.gmra.mrb[0].mxu0 %v947
    %v1105 = vpop.f32.mrb[0].mxu0
    %v1106 = vadd.f32 0.0, %v1105
    %v1107 = vpop.f32.mrb[0].mxu0
    %v1108 = vpop.f32.mrb[0].mxu0
    %v1109 = vadd.f32 0.0, %v1108
    %v1110 = vpop.f32.mrb[0].mxu0
    %1111 = vmatprep.mubr.bf16.mxu0 0
    %1112 = vmatmul.mubr.bf16.gmra.mrb[0].mxu0 %v948
    %v1113 = vpop.f32.mrb[0].mxu0
    %v1114 = vadd.f32 0.0, %v1113
    %v1115 = vpop.f32.mrb[0].mxu0
    %v1116 = vpop.f32.mrb[0].mxu0
    %v1117 = vadd.f32 0.0, %v1116
    %v1118 = vpop.f32.mrb[0].mxu0
    %1119 = vmatprep.mubr.bf16.mxu0 0
    %1120 = vmatmul.mubr.bf16.gmra.mrb[0].mxu0 %v949
    %v1121 = vpop.f32.mrb[0].mxu0
    %v1122 = vadd.f32 0.0, %v1121
    %v1123 = vpop.f32.mrb[0].mxu0
    %v1124 = vpop.f32.mrb[0].mxu0
    %v1125 = vadd.f32 0.0, %v1124
    %v1126 = vpop.f32.mrb[0].mxu0
    %1127 = vmatprep.mubr.bf16.mxu0 0
    %1128 = vmatmul.mubr.bf16.gmra.mrb[0].mxu0 %v950
    %v1129 = vpop.f32.mrb[0].mxu0
    %v1130 = vadd.f32 0.0, %v1129
    %v1131 = vpop.f32.mrb[0].mxu0
    %v1132 = vpop.f32.mrb[0].mxu0
    %v1133 = vadd.f32 0.0, %v1132
    %v1134 = vpop.f32.mrb[0].mxu0
    %1135 = vmatprep.mubr.bf16.mxu0 0
    %1136 = vmatmul.mubr.bf16.gmra.mrb[0].mxu0 %v951
    %v1137 = vpop.f32.mrb[0].mxu0
    %v1138 = vadd.f32 0.0, %v1137
    %v1139 = vpop.f32.mrb[0].mxu0
    %v1140 = vpop.f32.mrb[0].mxu0
    %v1141 = vadd.f32 0.0, %v1140
    %v1142 = vpop.f32.mrb[0].mxu0
    %1143 = vmatprep.mubr.bf16.mxu0 0
    %1144 = vmatmul.mubr.bf16.gmra.mrb[0].mxu0 %v952
    %v1145 = vpop.f32.mrb[0].mxu0
    %v1146 = vadd.f32 0.0, %v1145
    %v1147 = vpop.f32.mrb[0].mxu0
    %v1148 = vpop.f32.mrb[0].mxu0
    %v1149 = vadd.f32 0.0, %v1148
    %v1150 = vpop.f32.mrb[0].mxu0
    %1151 = vmatprep.mubr.bf16.mxu0 0
    %1152 = vmatmul.mubr.bf16.gmra.mrb[0].mxu0 %v953
    %v1153 = vpop.f32.mrb[0].mxu0
    %v1154 = vadd.f32 0.0, %v1153
    %v1155 = vpop.f32.mrb[0].mxu0
    %v1156 = vpop.f32.mrb[0].mxu0
    %v1157 = vadd.f32 0.0, %v1156
    %v1158 = vpop.f32.mrb[0].mxu0
    %1159 = vmatprep.mubr.bf16.mxu0 0
    %1160 = vmatmul.mubr.bf16.gmra.mrb[0].mxu0 %v954
    %v1161 = vpop.f32.mrb[0].mxu0
    %v1162 = vadd.f32 0.0, %v1161
    %v1163 = vpop.f32.mrb[0].mxu0
    %v1164 = vpop.f32.mrb[0].mxu0
    %v1165 = vadd.f32 0.0, %v1164
    %v1166 = vpop.f32.mrb[0].mxu0
    %1167 = vmatprep.mubr.bf16.mxu0 0
    %1168 = vmatmul.mubr.bf16.gmra.mrb[0].mxu0 %v955
    %v1169 = vpop.f32.mrb[0].mxu0
    %v1170 = vadd.f32 0.0, %v1169
    %v1171 = vpop.f32.mrb[0].mxu0
    %v1172 = vpop.f32.mrb[0].mxu0
    %v1173 = vadd.f32 0.0, %v1172
    %v1174 = vpop.f32.mrb[0].mxu0
    %1175 = vmatprep.mubr.bf16.mxu0 0
    %1176 = vmatmul.mubr.bf16.gmra.mrb[0].mxu0 %v956
    %v1177 = vpop.f32.mrb[0].mxu0
    %v1178 = vadd.f32 0.0, %v1177
    %v1179 = vpop.f32.mrb[0].mxu0
    %v1180 = vpop.f32.mrb[0].mxu0
    %v1181 = vadd.f32 0.0, %v1180
    %v1182 = vpop.f32.mrb[0].mxu0
    %1183 = vmatprep.mubr.bf16.mxu0 0
    %1184 = vmatmul.mubr.bf16.gmra.mrb[0].mxu0 %v957
    %v1185 = vpop.f32.mrb[0].mxu0
    %v1186 = vadd.f32 0.0, %v1185
    %v1187 = vpop.f32.mrb[0].mxu0
    %v1188 = vpop.f32.mrb[0].mxu0
    %v1189 = vadd.f32 0.0, %v1188
    %v1190 = vpop.f32.mrb[0].mxu0
    %1191 = vmatprep.mubr.bf16.mxu0 0
    %1192 = vmatmul.mubr.bf16.gmra.mrb[0].mxu0 %v958
    %v1193 = vpop.f32.mrb[0].mxu0
    %v1194 = vadd.f32 0.0, %v1193
    %v1195 = vpop.f32.mrb[0].mxu0
    %v1196 = vpop.f32.mrb[0].mxu0
    %v1197 = vadd.f32 0.0, %v1196
    %v1198 = vpop.f32.mrb[0].mxu0
    %1199 = vmatprep.mubr.bf16.mxu0 0
    %1200 = vmatmul.mubr.bf16.gmra.mrb[0].mxu0 %v959
    %v1201 = vpop.f32.mrb[0].mxu0
    %v1202 = vadd.f32 0.0, %v1201
    %v1203 = vpop.f32.mrb[0].mxu0
    %v1204 = vpop.f32.mrb[0].mxu0
    %v1205 = vadd.f32 0.0, %v1204
    %v1206 = vpop.f32.mrb[0].mxu0
    %1207 = vmatprep.mubr.bf16.mxu0 0
    %1208 = vmatmul.mubr.bf16.gmra.mrb[0].mxu0 %v960
    %v1209 = vpop.f32.mrb[0].mxu0
    %v1210 = vadd.f32 0.0, %v1209
    %v1211 = vpop.f32.mrb[0].mxu0
    %v1212 = vpop.f32.mrb[0].mxu0
    %v1213 = vadd.f32 0.0, %v1212
    %v1214 = vpop.f32.mrb[0].mxu0
    %1215 = vmatprep.mubr.bf16.mxu0 0
    %1216 = vmatmul.mubr.bf16.gmra.mrb[0].mxu0 %v961
    %v1217 = vpop.f32.mrb[0].mxu0
    %v1218 = vadd.f32 0.0, %v1217
    %v1219 = vpop.f32.mrb[0].mxu0
    %v1220 = vpop.f32.mrb[0].mxu0
    %v1221 = vadd.f32 0.0, %v1220
    %v1222 = vpop.f32.mrb[0].mxu0
    %1223 = vmatprep.mubr.bf16.mxu0 0
    %1224 = vmatmul.mubr.bf16.gmra.mrb[0].mxu0 %v962
    %v1225 = vpop.f32.mrb[0].mxu0
    %v1226 = vadd.f32 0.0, %v1225
    %v1227 = vpop.f32.mrb[0].mxu0
    %v1228 = vpop.f32.mrb[0].mxu0
    %v1229 = vadd.f32 0.0, %v1228
    %v1230 = vpop.f32.mrb[0].mxu0
    %1231 = vmatprep.mubr.bf16.mxu0 0
    %1232 = vmatmul.mubr.bf16.gmra.mrb[0].mxu0 %v963
    %v1233 = vpop.f32.mrb[0].mxu0
    %v1234 = vadd.f32 0.0, %v1233
    %v1235 = vpop.f32.mrb[0].mxu0
    %v1236 = vpop.f32.mrb[0].mxu0
    %v1237 = vadd.f32 0.0, %v1236
    %v1238 = vpop.f32.mrb[0].mxu0
    %1239 = vmatprep.mubr.bf16.mxu0 0
    %1240 = vmatmul.mubr.bf16.gmra.mrb[0].mxu0 %v964
    %v1241 = vpop.f32.mrb[0].mxu0
    %v1242 = vadd.f32 0.0, %v1241
    %v1243 = vpop.f32.mrb[0].mxu0
    %v1244 = vpop.f32.mrb[0].mxu0
    %v1245 = vadd.f32 0.0, %v1244
    %v1246 = vpop.f32.mrb[0].mxu0
    %1247 = vmatprep.mubr.bf16.mxu0 0
    %1248 = vmatmul.mubr.bf16.gmra.mrb[0].mxu0 %v965
    %v1249 = vpop.f32.mrb[0].mxu0
    %v1250 = vadd.f32 0.0, %v1249
    %v1251 = vpop.f32.mrb[0].mxu0
    %v1252 = vpop.f32.mrb[0].mxu0
    %v1253 = vadd.f32 0.0, %v1252
    %v1254 = vpop.f32.mrb[0].mxu0
    %1255 = vmatprep.mubr.bf16.mxu0 0
    %1256 = vmatmul.mubr.bf16.gmra.mrb[0].mxu0 %v966
    %v1257 = vpop.f32.mrb[0].mxu0
    %v1258 = vadd.f32 0.0, %v1257
    %v1259 = vpop.f32.mrb[0].mxu0
    %v1260 = vpop.f32.mrb[0].mxu0
    %v1261 = vadd.f32 0.0, %v1260
    %v1262 = vpop.f32.mrb[0].mxu0
    %1263 = vmatprep.mubr.bf16.mxu0 0
    %1264 = vmatmul.mubr.bf16.gmra.mrb[0].mxu0 %v967
    %v1265 = vpop.f32.mrb[0].mxu0
    %v1266 = vadd.f32 0.0, %v1265
    %v1267 = vpop.f32.mrb[0].mxu0
    %v1268 = vpop.f32.mrb[0].mxu0
    %v1269 = vadd.f32 0.0, %v1268
    %v1270 = vpop.f32.mrb[0].mxu0
    %1271 = vmatprep.mubr.bf16.mxu0 0
    %1272 = vmatmul.mubr.bf16.gmra.mrb[0].mxu0 %v968
    %v1273 = vpop.f32.mrb[0].mxu0
    %v1274 = vadd.f32 0.0, %v1273
    %v1275 = vpop.f32.mrb[0].mxu0
    %v1276 = vpop.f32.mrb[0].mxu0
    %v1277 = vadd.f32 0.0, %v1276
    %v1278 = vpop.f32.mrb[0].mxu0
    %1279 = vmatprep.mubr.bf16.mxu0 0
    %1280 = vmatmul.mubr.bf16.gmra.mrb[0].mxu0 %v969
    %v1281 = vpop.f32.mrb[0].mxu0
    %v1282 = vadd.f32 0.0, %v1281
    %v1283 = vpop.f32.mrb[0].mxu0
    %v1284 = vpop.f32.mrb[0].mxu0
    %v1285 = vadd.f32 0.0, %v1284
    %v1286 = vpop.f32.mrb[0].mxu0
    %1287 = vmatprep.mubr.bf16.mxu0 0
    %1288 = vmatmul.mubr.bf16.gmra.mrb[0].mxu0 %v970
    %v1289 = vpop.f32.mrb[0].mxu0
    %v1290 = vadd.f32 0.0, %v1289
    %v1291 = vpop.f32.mrb[0].mxu0
    %v1292 = vpop.f32.mrb[0].mxu0
    %v1293 = vadd.f32 0.0, %v1292
    %v1294 = vpop.f32.mrb[0].mxu0
    %1295 = vmatprep.mubr.bf16.mxu0 0
    %1296 = vmatmul.mubr.bf16.gmra.mrb[0].mxu0 %v971
    %v1297 = vpop.f32.mrb[0].mxu0
    %v1298 = vadd.f32 0.0, %v1297
    %v1299 = vpop.f32.mrb[0].mxu0
    %v1300 = vpop.f32.mrb[0].mxu0
    %v1301 = vadd.f32 0.0, %v1300
    %v1302 = vpop.f32.mrb[0].mxu0
    %1303 = vmatprep.mubr.bf16.mxu0 0
    %1304 = vmatmul.mubr.bf16.gmra.mrb[0].mxu0 %v972
    %v1305 = vpop.f32.mrb[0].mxu0
    %v1306 = vadd.f32 0.0, %v1305
    %v1307 = vpop.f32.mrb[0].mxu0
    %v1308 = vpop.f32.mrb[0].mxu0
    %v1309 = vadd.f32 0.0, %v1308
    %v1310 = vpop.f32.mrb[0].mxu0
    %1311 = vmatprep.mubr.bf16.mxu0 0
    %1312 = vmatmul.mubr.bf16.gmra.mrb[0].mxu0 %v973
    %v1313 = vpop.f32.mrb[0].mxu0
    %v1314 = vadd.f32 0.0, %v1313
    %v1315 = vpop.f32.mrb[0].mxu0
    %v1316 = vpop.f32.mrb[0].mxu0
    %v1317 = vadd.f32 0.0, %v1316
    %v1318 = vpop.f32.mrb[0].mxu0
    %1319 = vmatprep.mubr.bf16.mxu0 0
    %1320 = vmatmul.mubr.bf16.gmra.mrb[0].mxu0 %v974
    %v1321 = vpop.f32.mrb[0].mxu0
    %v1322 = vadd.f32 0.0, %v1321
    %v1323 = vpop.f32.mrb[0].mxu0
    %v1324 = vpop.f32.mrb[0].mxu0
    %v1325 = vadd.f32 0.0, %v1324
    %v1326 = vpop.f32.mrb[0].mxu0
    %1327 = vdwg.mxu0
    %v1392 = vunpack.c.l.b16 %v875
    %v1393 = vunpack.c.l.b16 %v876
    %v1394 = vunpack.c.l.b16 %v877
    %v1395 = vunpack.c.l.b16 %v878
    %v1396 = vunpack.c.l.b16 %v879
    %v1397 = vunpack.c.l.b16 %v880
    %v1398 = vunpack.c.l.b16 %v881
    %v1399 = vunpack.c.l.b16 %v882
    %v1400 = vunpack.c.l.b16 %v883
    %v1401 = vunpack.c.l.b16 %v884
    %v1402 = vunpack.c.l.b16 %v885
    %v1403 = vunpack.c.l.b16 %v886
    %v1404 = vunpack.c.l.b16 %v887
    %v1405 = vunpack.c.l.b16 %v888
    %v1406 = vunpack.c.l.b16 %v889
    %v1407 = vunpack.c.l.b16 %v890
    %v1408 = vunpack.c.l.b16 %v891
    %v1409 = vunpack.c.l.b16 %v892
    %v1410 = vunpack.c.l.b16 %v893
    %v1411 = vunpack.c.l.b16 %v894
    %v1412 = vunpack.c.l.b16 %v895
    %v1413 = vunpack.c.l.b16 %v896
    %v1414 = vunpack.c.l.b16 %v897
    %v1415 = vunpack.c.l.b16 %v898
    %v1416 = vunpack.c.l.b16 %v899
    %v1417 = vunpack.c.l.b16 %v900
    %v1418 = vunpack.c.l.b16 %v901
    %v1419 = vunpack.c.l.b16 %v902
    %v1420 = vunpack.c.l.b16 %v903
    %v1421 = vunpack.c.l.b16 %v904
    %v1422 = vunpack.c.l.b16 %v905
    %v1423 = vunpack.c.l.b16 %v906
    %v1424 = vunpack.c.l.b16 %v907
    %v1425 = vunpack.c.l.b16 %v908
    %v1426 = vunpack.c.l.b16 %v909
    %v1427 = vunpack.c.l.b16 %v910
    %v1428 = vunpack.c.l.b16 %v911
    %v1429 = vunpack.c.l.b16 %v912
    %v1430 = vunpack.c.l.b16 %v913
    %v1431 = vunpack.c.l.b16 %v914
    %v1432 = vunpack.c.l.b16 %v915
    %v1433 = vunpack.c.l.b16 %v916
    %v1434 = vunpack.c.l.b16 %v917
    %v1435 = vunpack.c.l.b16 %v918
    %v1436 = vunpack.c.l.b16 %v919
    %v1437 = vunpack.c.l.b16 %v920
    %v1438 = vunpack.c.l.b16 %v921
    %v1439 = vunpack.c.l.b16 %v922
    %v1440 = vunpack.c.l.b16 %v923
    %v1441 = vunpack.c.l.b16 %v924
    %v1442 = vunpack.c.l.b16 %v925
    %v1443 = vunpack.c.l.b16 %v926
    %v1444 = vunpack.c.l.b16 %v927
    %v1445 = vunpack.c.l.b16 %v928
    %v1446 = vunpack.c.l.b16 %v929
    %v1447 = vunpack.c.l.b16 %v930
    %v1448 = vunpack.c.l.b16 %v931
    %v1449 = vunpack.c.l.b16 %v932
    %v1450 = vunpack.c.l.b16 %v933
    %v1451 = vunpack.c.l.b16 %v934
    %v1452 = vunpack.c.l.b16 %v935
    %v1453 = vunpack.c.l.b16 %v936
    %v1454 = vunpack.c.l.b16 %v937
    %v1455 = vunpack.c.l.b16 %v938
    %v1456 = vpack.c.b16 %v1393, %v1392
    %v1457 = vpack.c.b16 %v1395, %v1394
    %v1458 = vpack.c.b16 %v1397, %v1396
    %v1459 = vpack.c.b16 %v1399, %v1398
    %v1460 = vpack.c.b16 %v1401, %v1400
    %v1461 = vpack.c.b16 %v1403, %v1402
    %v1462 = vpack.c.b16 %v1405, %v1404
    %v1463 = vpack.c.b16 %v1407, %v1406
    %v1464 = vpack.c.b16 %v1409, %v1408
    %v1465 = vpack.c.b16 %v1411, %v1410
    %v1466 = vpack.c.b16 %v1413, %v1412
    %v1467 = vpack.c.b16 %v1415, %v1414
    %v1468 = vpack.c.b16 %v1417, %v1416
    %v1469 = vpack.c.b16 %v1419, %v1418
    %v1470 = vpack.c.b16 %v1421, %v1420
    %v1471 = vpack.c.b16 %v1423, %v1422
    %v1472 = vpack.c.b16 %v1425, %v1424
    %v1473 = vpack.c.b16 %v1427, %v1426
    %v1474 = vpack.c.b16 %v1429, %v1428
    %v1475 = vpack.c.b16 %v1431, %v1430
    %v1476 = vpack.c.b16 %v1433, %v1432
    %v1477 = vpack.c.b16 %v1435, %v1434
    %v1478 = vpack.c.b16 %v1437, %v1436
    %v1479 = vpack.c.b16 %v1439, %v1438
    %v1480 = vpack.c.b16 %v1441, %v1440
    %v1481 = vpack.c.b16 %v1443, %v1442
    %v1482 = vpack.c.b16 %v1445, %v1444
    %v1483 = vpack.c.b16 %v1447, %v1446
    %v1484 = vpack.c.b16 %v1449, %v1448
    %v1485 = vpack.c.b16 %v1451, %v1450
    %v1486 = vpack.c.b16 %v1453, %v1452
    %v1487 = vpack.c.b16 %v1455, %v1454
    %v1492 = vunpack.c.l.b16 %v939
    %v1493 = vunpack.c.l.b16 %v940
    %v1494 = vunpack.c.l.b16 %v941
    %v1495 = vunpack.c.l.b16 %v942
    %v1496 = vpack.c.b16 %v1493, %v1492
    %v1497 = vpack.c.b16 %v1495, %v1494
    %v1501 = vsel %vm283, %v1456, 0
    %v1504 = vsel %vm283, %v1457, 0
    %v1507 = vsel %vm283, %v1458, 0
    %v1510 = vsel %vm283, %v1459, 0
    %v1513 = vsel %vm283, %v1460, 0
    %v1516 = vsel %vm283, %v1461, 0
    %v1519 = vsel %vm283, %v1462, 0
    %v1522 = vsel %vm283, %v1463, 0
    %v1525 = vsel %vm283, %v1464, 0
    %v1528 = vsel %vm283, %v1465, 0
    %v1531 = vsel %vm283, %v1466, 0
    %v1534 = vsel %vm283, %v1467, 0
    %v1537 = vsel %vm283, %v1468, 0
    %v1540 = vsel %vm283, %v1469, 0
    %v1543 = vsel %vm283, %v1470, 0
    %v1546 = vsel %vm283, %v1471, 0
    %v1549 = vsel %vm283, %v1472, 0
    %v1552 = vsel %vm283, %v1473, 0
    %v1555 = vsel %vm283, %v1474, 0
    %v1558 = vsel %vm283, %v1475, 0
    %v1561 = vsel %vm283, %v1476, 0
    %v1564 = vsel %vm283, %v1477, 0
    %v1567 = vsel %vm283, %v1478, 0
    %v1570 = vsel %vm283, %v1479, 0
    %v1573 = vsel %vm283, %v1480, 0
    %v1576 = vsel %vm283, %v1481, 0
    %v1579 = vsel %vm283, %v1482, 0
    %v1582 = vsel %vm283, %v1483, 0
    %v1585 = vsel %vm283, %v1484, 0
    %v1588 = vsel %vm283, %v1485, 0
    %v1591 = vsel %vm283, %v1486, 0
    %v1594 = vsel %vm283, %v1487, 0
    %1596 = vmatprep.subr.bf16.mxu0 0
    %1597 = vmatpush1.bf16.msra.mxu0 %v1496
    %1598 = vmatprep.subr.bf16.mxu0 0
    %1599 = vmatpush1.bf16.msra.mxu0 %v1497
    %1600 = vmatprep.subr.bf16.mxu0 0
    %1601 = vmatpush1.bf16.msra.mxu0 0
    %1602 = vmatprep.subr.bf16.mxu0 0
    %1603 = vmatpush1.bf16.msra.mxu0 0
    %1604 = vmatprep.subr.bf16.mxu0 0
    %1605 = vmatpush1.bf16.msra.mxu0 0
    %1606 = vmatprep.subr.bf16.mxu0 0
    %1607 = vmatpush1.bf16.msra.mxu0 0
    %1608 = vmatprep.subr.bf16.mxu0 0
    %1609 = vmatpush1.bf16.msra.mxu0 0
    %1610 = vmatprep.subr.bf16.mxu0 0
    %1611 = vmatpush1.bf16.msra.mxu0 0
    %1612 = vmatprep.subr.bf16.mxu0 0
    %1613 = vmatpush1.bf16.msra.mxu0 0
    %1614 = vmatprep.subr.bf16.mxu0 0
    %1615 = vmatpush1.bf16.msra.mxu0 0
    %1616 = vmatprep.subr.bf16.mxu0 0
    %1617 = vmatpush1.bf16.msra.mxu0 0
    %1618 = vmatprep.subr.bf16.mxu0 0
    %1619 = vmatpush1.bf16.msra.mxu0 0
    %1620 = vmatprep.subr.bf16.mxu0 0
    %1621 = vmatpush1.bf16.msra.mxu0 0
    %1622 = vmatprep.subr.bf16.mxu0 0
    %1623 = vmatpush1.bf16.msra.mxu0 0
    %1624 = vmatprep.subr.bf16.mxu0 0
    %1625 = vmatpush1.bf16.msra.mxu0 0
    %1626 = vmatprep.subr.bf16.mxu0 0
    %1627 = vmatpush1.bf16.msra.mxu0 0
    %1628 = vmatprep.mubr.bf16.mxu0 0
    %1629 = vmatmul.mubr.bf16.gmra.mrb[0].mxu0 %v1501
    %v1630 = vpop.f32.mrb[0].mxu0
    %v1631 = vadd.f32 %v1074, %v1630
    %v1632 = vpop.f32.mrb[0].mxu0
    %v1633 = vpop.f32.mrb[0].mxu0
    %v1634 = vadd.f32 %v1077, %v1633
    %v1635 = vpop.f32.mrb[0].mxu0
    %1636 = vmatprep.mubr.bf16.mxu0 0
    %1637 = vmatmul.mubr.bf16.gmra.mrb[0].mxu0 %v1504
    %v1638 = vpop.f32.mrb[0].mxu0
    %v1639 = vadd.f32 %v1082, %v1638
    %v1640 = vpop.f32.mrb[0].mxu0
    %v1641 = vpop.f32.mrb[0].mxu0
    %v1642 = vadd.f32 %v1085, %v1641
    %v1643 = vpop.f32.mrb[0].mxu0
    %1644 = vmatprep.mubr.bf16.mxu0 0
    %1645 = vmatmul.mubr.bf16.gmra.mrb[0].mxu0 %v1507
    %v1646 = vpop.f32.mrb[0].mxu0
    %v1647 = vadd.f32 %v1090, %v1646
    %v1648 = vpop.f32.mrb[0].mxu0
    %v1649 = vpop.f32.mrb[0].mxu0
    %v1650 = vadd.f32 %v1093, %v1649
    %v1651 = vpop.f32.mrb[0].mxu0
    %1652 = vmatprep.mubr.bf16.mxu0 0
    %1653 = vmatmul.mubr.bf16.gmra.mrb[0].mxu0 %v1510
    %v1654 = vpop.f32.mrb[0].mxu0
    %v1655 = vadd.f32 %v1098, %v1654
    %v1656 = vpop.f32.mrb[0].mxu0
    %v1657 = vpop.f32.mrb[0].mxu0
    %v1658 = vadd.f32 %v1101, %v1657
    %v1659 = vpop.f32.mrb[0].mxu0
    %1660 = vmatprep.mubr.bf16.mxu0 0
    %1661 = vmatmul.mubr.bf16.gmra.mrb[0].mxu0 %v1513
    %v1662 = vpop.f32.mrb[0].mxu0
    %v1663 = vadd.f32 %v1106, %v1662
    %v1664 = vpop.f32.mrb[0].mxu0
    %v1665 = vpop.f32.mrb[0].mxu0
    %v1666 = vadd.f32 %v1109, %v1665
    %v1667 = vpop.f32.mrb[0].mxu0
    %1668 = vmatprep.mubr.bf16.mxu0 0
    %1669 = vmatmul.mubr.bf16.gmra.mrb[0].mxu0 %v1516
    %v1670 = vpop.f32.mrb[0].mxu0
    %v1671 = vadd.f32 %v1114, %v1670
    %v1672 = vpop.f32.mrb[0].mxu0
    %v1673 = vpop.f32.mrb[0].mxu0
    %v1674 = vadd.f32 %v1117, %v1673
    %v1675 = vpop.f32.mrb[0].mxu0
    %1676 = vmatprep.mubr.bf16.mxu0 0
    %1677 = vmatmul.mubr.bf16.gmra.mrb[0].mxu0 %v1519
    %v1678 = vpop.f32.mrb[0].mxu0
    %v1679 = vadd.f32 %v1122, %v1678
    %v1680 = vpop.f32.mrb[0].mxu0
    %v1681 = vpop.f32.mrb[0].mxu0
    %v1682 = vadd.f32 %v1125, %v1681
    %v1683 = vpop.f32.mrb[0].mxu0
    %1684 = vmatprep.mubr.bf16.mxu0 0
    %1685 = vmatmul.mubr.bf16.gmra.mrb[0].mxu0 %v1522
    %v1686 = vpop.f32.mrb[0].mxu0
    %v1687 = vadd.f32 %v1130, %v1686
    %v1688 = vpop.f32.mrb[0].mxu0
    %v1689 = vpop.f32.mrb[0].mxu0
    %v1690 = vadd.f32 %v1133, %v1689
    %v1691 = vpop.f32.mrb[0].mxu0
    %1692 = vmatprep.mubr.bf16.mxu0 0
    %1693 = vmatmul.mubr.bf16.gmra.mrb[0].mxu0 %v1525
    %v1694 = vpop.f32.mrb[0].mxu0
    %v1695 = vadd.f32 %v1138, %v1694
    %v1696 = vpop.f32.mrb[0].mxu0
    %v1697 = vpop.f32.mrb[0].mxu0
    %v1698 = vadd.f32 %v1141, %v1697
    %v1699 = vpop.f32.mrb[0].mxu0
    %1700 = vmatprep.mubr.bf16.mxu0 0
    %1701 = vmatmul.mubr.bf16.gmra.mrb[0].mxu0 %v1528
    %v1702 = vpop.f32.mrb[0].mxu0
    %v1703 = vadd.f32 %v1146, %v1702
    %v1704 = vpop.f32.mrb[0].mxu0
    %v1705 = vpop.f32.mrb[0].mxu0
    %v1706 = vadd.f32 %v1149, %v1705
    %v1707 = vpop.f32.mrb[0].mxu0
    %1708 = vmatprep.mubr.bf16.mxu0 0
    %1709 = vmatmul.mubr.bf16.gmra.mrb[0].mxu0 %v1531
    %v1710 = vpop.f32.mrb[0].mxu0
    %v1711 = vadd.f32 %v1154, %v1710
    %v1712 = vpop.f32.mrb[0].mxu0
    %v1713 = vpop.f32.mrb[0].mxu0
    %v1714 = vadd.f32 %v1157, %v1713
    %v1715 = vpop.f32.mrb[0].mxu0
    %1716 = vmatprep.mubr.bf16.mxu0 0
    %1717 = vmatmul.mubr.bf16.gmra.mrb[0].mxu0 %v1534
    %v1718 = vpop.f32.mrb[0].mxu0
    %v1719 = vadd.f32 %v1162, %v1718
    %v1720 = vpop.f32.mrb[0].mxu0
    %v1721 = vpop.f32.mrb[0].mxu0
    %v1722 = vadd.f32 %v1165, %v1721
    %v1723 = vpop.f32.mrb[0].mxu0
    %1724 = vmatprep.mubr.bf16.mxu0 0
    %1725 = vmatmul.mubr.bf16.gmra.mrb[0].mxu0 %v1537
    %v1726 = vpop.f32.mrb[0].mxu0
    %v1727 = vadd.f32 %v1170, %v1726
    %v1728 = vpop.f32.mrb[0].mxu0
    %v1729 = vpop.f32.mrb[0].mxu0
    %v1730 = vadd.f32 %v1173, %v1729
    %v1731 = vpop.f32.mrb[0].mxu0
    %1732 = vmatprep.mubr.bf16.mxu0 0
    %1733 = vmatmul.mubr.bf16.gmra.mrb[0].mxu0 %v1540
    %v1734 = vpop.f32.mrb[0].mxu0
    %v1735 = vadd.f32 %v1178, %v1734
    %v1736 = vpop.f32.mrb[0].mxu0
    %v1737 = vpop.f32.mrb[0].mxu0
    %v1738 = vadd.f32 %v1181, %v1737
    %v1739 = vpop.f32.mrb[0].mxu0
    %1740 = vmatprep.mubr.bf16.mxu0 0
    %1741 = vmatmul.mubr.bf16.gmra.mrb[0].mxu0 %v1543
    %v1742 = vpop.f32.mrb[0].mxu0
    %v1743 = vadd.f32 %v1186, %v1742
    %v1744 = vpop.f32.mrb[0].mxu0
    %v1745 = vpop.f32.mrb[0].mxu0
    %v1746 = vadd.f32 %v1189, %v1745
    %v1747 = vpop.f32.mrb[0].mxu0
    %1748 = vmatprep.mubr.bf16.mxu0 0
    %1749 = vmatmul.mubr.bf16.gmra.mrb[0].mxu0 %v1546
    %v1750 = vpop.f32.mrb[0].mxu0
    %v1751 = vadd.f32 %v1194, %v1750
    %v1752 = vpop.f32.mrb[0].mxu0
    %v1753 = vpop.f32.mrb[0].mxu0
    %v1754 = vadd.f32 %v1197, %v1753
    %v1755 = vpop.f32.mrb[0].mxu0
    %1756 = vmatprep.mubr.bf16.mxu0 0
    %1757 = vmatmul.mubr.bf16.gmra.mrb[0].mxu0 %v1549
    %v1758 = vpop.f32.mrb[0].mxu0
    %v1759 = vadd.f32 %v1202, %v1758
    %v1760 = vpop.f32.mrb[0].mxu0
    %v1761 = vpop.f32.mrb[0].mxu0
    %v1762 = vadd.f32 %v1205, %v1761
    %v1763 = vpop.f32.mrb[0].mxu0
    %1764 = vmatprep.mubr.bf16.mxu0 0
    %1765 = vmatmul.mubr.bf16.gmra.mrb[0].mxu0 %v1552
    %v1766 = vpop.f32.mrb[0].mxu0
    %v1767 = vadd.f32 %v1210, %v1766
    %v1768 = vpop.f32.mrb[0].mxu0
    %v1769 = vpop.f32.mrb[0].mxu0
    %v1770 = vadd.f32 %v1213, %v1769
    %v1771 = vpop.f32.mrb[0].mxu0
    %1772 = vmatprep.mubr.bf16.mxu0 0
    %1773 = vmatmul.mubr.bf16.gmra.mrb[0].mxu0 %v1555
    %v1774 = vpop.f32.mrb[0].mxu0
    %v1775 = vadd.f32 %v1218, %v1774
    %v1776 = vpop.f32.mrb[0].mxu0
    %v1777 = vpop.f32.mrb[0].mxu0
    %v1778 = vadd.f32 %v1221, %v1777
    %v1779 = vpop.f32.mrb[0].mxu0
    %1780 = vmatprep.mubr.bf16.mxu0 0
    %1781 = vmatmul.mubr.bf16.gmra.mrb[0].mxu0 %v1558
    %v1782 = vpop.f32.mrb[0].mxu0
    %v1783 = vadd.f32 %v1226, %v1782
    %v1784 = vpop.f32.mrb[0].mxu0
    %v1785 = vpop.f32.mrb[0].mxu0
    %v1786 = vadd.f32 %v1229, %v1785
    %v1787 = vpop.f32.mrb[0].mxu0
    %1788 = vmatprep.mubr.bf16.mxu0 0
    %1789 = vmatmul.mubr.bf16.gmra.mrb[0].mxu0 %v1561
    %v1790 = vpop.f32.mrb[0].mxu0
    %v1791 = vadd.f32 %v1234, %v1790
    %v1792 = vpop.f32.mrb[0].mxu0
    %v1793 = vpop.f32.mrb[0].mxu0
    %v1794 = vadd.f32 %v1237, %v1793
    %v1795 = vpop.f32.mrb[0].mxu0
    %1796 = vmatprep.mubr.bf16.mxu0 0
    %1797 = vmatmul.mubr.bf16.gmra.mrb[0].mxu0 %v1564
    %v1798 = vpop.f32.mrb[0].mxu0
    %v1799 = vadd.f32 %v1242, %v1798
    %v1800 = vpop.f32.mrb[0].mxu0
    %v1801 = vpop.f32.mrb[0].mxu0
    %v1802 = vadd.f32 %v1245, %v1801
    %v1803 = vpop.f32.mrb[0].mxu0
    %1804 = vmatprep.mubr.bf16.mxu0 0
    %1805 = vmatmul.mubr.bf16.gmra.mrb[0].mxu0 %v1567
    %v1806 = vpop.f32.mrb[0].mxu0
    %v1807 = vadd.f32 %v1250, %v1806
    %v1808 = vpop.f32.mrb[0].mxu0
    %v1809 = vpop.f32.mrb[0].mxu0
    %v1810 = vadd.f32 %v1253, %v1809
    %v1811 = vpop.f32.mrb[0].mxu0
    %1812 = vmatprep.mubr.bf16.mxu0 0
    %1813 = vmatmul.mubr.bf16.gmra.mrb[0].mxu0 %v1570
    %v1814 = vpop.f32.mrb[0].mxu0
    %v1815 = vadd.f32 %v1258, %v1814
    %v1816 = vpop.f32.mrb[0].mxu0
    %v1817 = vpop.f32.mrb[0].mxu0
    %v1818 = vadd.f32 %v1261, %v1817
    %v1819 = vpop.f32.mrb[0].mxu0
    %1820 = vmatprep.mubr.bf16.mxu0 0
    %1821 = vmatmul.mubr.bf16.gmra.mrb[0].mxu0 %v1573
    %v1822 = vpop.f32.mrb[0].mxu0
    %v1823 = vadd.f32 %v1266, %v1822
    %v1824 = vpop.f32.mrb[0].mxu0
    %v1825 = vpop.f32.mrb[0].mxu0
    %v1826 = vadd.f32 %v1269, %v1825
    %v1827 = vpop.f32.mrb[0].mxu0
    %1828 = vmatprep.mubr.bf16.mxu0 0
    %1829 = vmatmul.mubr.bf16.gmra.mrb[0].mxu0 %v1576
    %v1830 = vpop.f32.mrb[0].mxu0
    %v1831 = vadd.f32 %v1274, %v1830
    %v1832 = vpop.f32.mrb[0].mxu0
    %v1833 = vpop.f32.mrb[0].mxu0
    %v1834 = vadd.f32 %v1277, %v1833
    %v1835 = vpop.f32.mrb[0].mxu0
    %1836 = vmatprep.mubr.bf16.mxu0 0
    %1837 = vmatmul.mubr.bf16.gmra.mrb[0].mxu0 %v1579
    %v1838 = vpop.f32.mrb[0].mxu0
    %v1839 = vadd.f32 %v1282, %v1838
    %v1840 = vpop.f32.mrb[0].mxu0
    %v1841 = vpop.f32.mrb[0].mxu0
    %v1842 = vadd.f32 %v1285, %v1841
    %v1843 = vpop.f32.mrb[0].mxu0
    %1844 = vmatprep.mubr.bf16.mxu0 0
    %1845 = vmatmul.mubr.bf16.gmra.mrb[0].mxu0 %v1582
    %v1846 = vpop.f32.mrb[0].mxu0
    %v1847 = vadd.f32 %v1290, %v1846
    %v1848 = vpop.f32.mrb[0].mxu0
    %v1849 = vpop.f32.mrb[0].mxu0
    %v1850 = vadd.f32 %v1293, %v1849
    %v1851 = vpop.f32.mrb[0].mxu0
    %1852 = vmatprep.mubr.bf16.mxu0 0
    %1853 = vmatmul.mubr.bf16.gmra.mrb[0].mxu0 %v1585
    %v1854 = vpop.f32.mrb[0].mxu0
    %v1855 = vadd.f32 %v1298, %v1854
    %v1856 = vpop.f32.mrb[0].mxu0
    %v1857 = vpop.f32.mrb[0].mxu0
    %v1858 = vadd.f32 %v1301, %v1857
    %v1859 = vpop.f32.mrb[0].mxu0
    %1860 = vmatprep.mubr.bf16.mxu0 0
    %1861 = vmatmul.mubr.bf16.gmra.mrb[0].mxu0 %v1588
    %v1862 = vpop.f32.mrb[0].mxu0
    %v1863 = vadd.f32 %v1306, %v1862
    %v1864 = vpop.f32.mrb[0].mxu0
    %v1865 = vpop.f32.mrb[0].mxu0
    %v1866 = vadd.f32 %v1309, %v1865
    %v1867 = vpop.f32.mrb[0].mxu0
    %1868 = vmatprep.mubr.bf16.mxu0 0
    %1869 = vmatmul.mubr.bf16.gmra.mrb[0].mxu0 %v1591
    %v1870 = vpop.f32.mrb[0].mxu0
    %v1871 = vadd.f32 %v1314, %v1870
    %v1872 = vpop.f32.mrb[0].mxu0
    %v1873 = vpop.f32.mrb[0].mxu0
    %v1874 = vadd.f32 %v1317, %v1873
    %v1875 = vpop.f32.mrb[0].mxu0
    %1876 = vmatprep.mubr.bf16.mxu0 0
    %1877 = vmatmul.mubr.bf16.gmra.mrb[0].mxu0 %v1594
    %v1878 = vpop.f32.mrb[0].mxu0
    %v1879 = vadd.f32 %v1322, %v1878
    %v1880 = vpop.f32.mrb[0].mxu0
    %v1881 = vpop.f32.mrb[0].mxu0
    %v1882 = vadd.f32 %v1325, %v1881
    %v1883 = vpop.f32.mrb[0].mxu0
    %1884 = vdwg.mxu0
    %v1885 = vld [vmem:[%s7] sm:$0x1]
    %v1887 = vlaneseq
    %v1888 = vshrl.u32 %v1887, 7
    %v1889 = vsub.s32 0, %v1888
    %v1890 = vrot.slane %v1885, %v1889
    %v1892 = vmul.f32 %v1631, %v1890
    %v1893 = vmul.f32 %v1634, %v1890
    %v1894 = vmul.f32 %v1639, %v1890
    %v1895 = vmul.f32 %v1642, %v1890
    %v1896 = vmul.f32 %v1647, %v1890
    %v1897 = vmul.f32 %v1650, %v1890
    %v1898 = vmul.f32 %v1655, %v1890
    %v1899 = vmul.f32 %v1658, %v1890
    %v1900 = vmul.f32 %v1663, %v1890
    %v1901 = vmul.f32 %v1666, %v1890
    %v1902 = vmul.f32 %v1671, %v1890
    %v1903 = vmul.f32 %v1674, %v1890
    %v1904 = vmul.f32 %v1679, %v1890
    %v1905 = vmul.f32 %v1682, %v1890
    %v1906 = vmul.f32 %v1687, %v1890
    %v1907 = vmul.f32 %v1690, %v1890
    %v1908 = vmul.f32 %v1695, %v1890
    %v1909 = vmul.f32 %v1698, %v1890
    %v1910 = vmul.f32 %v1703, %v1890
    %v1911 = vmul.f32 %v1706, %v1890
    %v1912 = vmul.f32 %v1711, %v1890
    %v1913 = vmul.f32 %v1714, %v1890
    %v1914 = vmul.f32 %v1719, %v1890
    %v1915 = vmul.f32 %v1722, %v1890
    %v1916 = vmul.f32 %v1727, %v1890
    %v1917 = vmul.f32 %v1730, %v1890
    %v1918 = vmul.f32 %v1735, %v1890
    %v1919 = vmul.f32 %v1738, %v1890
    %v1920 = vmul.f32 %v1743, %v1890
    %v1921 = vmul.f32 %v1746, %v1890
    %v1922 = vmul.f32 %v1751, %v1890
    %v1923 = vmul.f32 %v1754, %v1890
    %v1924 = vmul.f32 %v1759, %v1890
    %v1925 = vmul.f32 %v1762, %v1890
    %v1926 = vmul.f32 %v1767, %v1890
    %v1927 = vmul.f32 %v1770, %v1890
    %v1928 = vmul.f32 %v1775, %v1890
    %v1929 = vmul.f32 %v1778, %v1890
    %v1930 = vmul.f32 %v1783, %v1890
    %v1931 = vmul.f32 %v1786, %v1890
    %v1932 = vmul.f32 %v1791, %v1890
    %v1933 = vmul.f32 %v1794, %v1890
    %v1934 = vmul.f32 %v1799, %v1890
    %v1935 = vmul.f32 %v1802, %v1890
    %v1936 = vmul.f32 %v1807, %v1890
    %v1937 = vmul.f32 %v1810, %v1890
    %v1938 = vmul.f32 %v1815, %v1890
    %v1939 = vmul.f32 %v1818, %v1890
    %v1940 = vmul.f32 %v1823, %v1890
    %v1941 = vmul.f32 %v1826, %v1890
    %v1942 = vmul.f32 %v1831, %v1890
    %v1943 = vmul.f32 %v1834, %v1890
    %v1944 = vmul.f32 %v1839, %v1890
    %v1945 = vmul.f32 %v1842, %v1890
    %v1946 = vmul.f32 %v1847, %v1890
    %v1947 = vmul.f32 %v1850, %v1890
    %v1948 = vmul.f32 %v1855, %v1890
    %v1949 = vmul.f32 %v1858, %v1890
    %v1950 = vmul.f32 %v1863, %v1890
    %v1951 = vmul.f32 %v1866, %v1890
    %v1952 = vmul.f32 %v1871, %v1890
    %v1953 = vmul.f32 %v1874, %v1890
    %v1954 = vmul.f32 %v1879, %v1890
    %v1955 = vmul.f32 %v1882, %v1890
    %v1956 = vld [vmem:[%s8] sm:$0x1]
    %v1958 = vlaneseq
    %v1959 = vshrl.u32 %v1958, 7
    %v1960 = vsub.s32 0, %v1959
    %v1961 = vrot.slane %v1956, %v1960
    %v1963 = vadd.f32 %v1892, %v1961
    %v1964 = vadd.f32 %v1893, %v1961
    %v1965 = vadd.f32 %v1894, %v1961
    %v1966 = vadd.f32 %v1895, %v1961
    %v1967 = vadd.f32 %v1896, %v1961
    %v1968 = vadd.f32 %v1897, %v1961
    %v1969 = vadd.f32 %v1898, %v1961
    %v1970 = vadd.f32 %v1899, %v1961
    %v1971 = vadd.f32 %v1900, %v1961
    %v1972 = vadd.f32 %v1901, %v1961
    %v1973 = vadd.f32 %v1902, %v1961
    %v1974 = vadd.f32 %v1903, %v1961
    %v1975 = vadd.f32 %v1904, %v1961
    %v1976 = vadd.f32 %v1905, %v1961
    %v1977 = vadd.f32 %v1906, %v1961
    %v1978 = vadd.f32 %v1907, %v1961
    %v1979 = vadd.f32 %v1908, %v1961
    %v1980 = vadd.f32 %v1909, %v1961
    %v1981 = vadd.f32 %v1910, %v1961
    %v1982 = vadd.f32 %v1911, %v1961
    %v1983 = vadd.f32 %v1912, %v1961
    %v1984 = vadd.f32 %v1913, %v1961
    %v1985 = vadd.f32 %v1914, %v1961
    %v1986 = vadd.f32 %v1915, %v1961
    %v1987 = vadd.f32 %v1916, %v1961
    %v1988 = vadd.f32 %v1917, %v1961
    %v1989 = vadd.f32 %v1918, %v1961
    %v1990 = vadd.f32 %v1919, %v1961
    %v1991 = vadd.f32 %v1920, %v1961
    %v1992 = vadd.f32 %v1921, %v1961
    %v1993 = vadd.f32 %v1922, %v1961
    %v1994 = vadd.f32 %v1923, %v1961
    %v1995 = vadd.f32 %v1924, %v1961
    %v1996 = vadd.f32 %v1925, %v1961
    %v1997 = vadd.f32 %v1926, %v1961
    %v1998 = vadd.f32 %v1927, %v1961
    %v1999 = vadd.f32 %v1928, %v1961
    %v2000 = vadd.f32 %v1929, %v1961
    %v2001 = vadd.f32 %v1930, %v1961
    %v2002 = vadd.f32 %v1931, %v1961
    %v2003 = vadd.f32 %v1932, %v1961
    %v2004 = vadd.f32 %v1933, %v1961
    %v2005 = vadd.f32 %v1934, %v1961
    %v2006 = vadd.f32 %v1935, %v1961
    %v2007 = vadd.f32 %v1936, %v1961
    %v2008 = vadd.f32 %v1937, %v1961
    %v2009 = vadd.f32 %v1938, %v1961
    %v2010 = vadd.f32 %v1939, %v1961
    %v2011 = vadd.f32 %v1940, %v1961
    %v2012 = vadd.f32 %v1941, %v1961
    %v2013 = vadd.f32 %v1942, %v1961
    %v2014 = vadd.f32 %v1943, %v1961
    %v2015 = vadd.f32 %v1944, %v1961
    %v2016 = vadd.f32 %v1945, %v1961
    %v2017 = vadd.f32 %v1946, %v1961
    %v2018 = vadd.f32 %v1947, %v1961
    %v2019 = vadd.f32 %v1948, %v1961
    %v2020 = vadd.f32 %v1949, %v1961
    %v2021 = vadd.f32 %v1950, %v1961
    %v2022 = vadd.f32 %v1951, %v1961
    %v2023 = vadd.f32 %v1952, %v1961
    %v2024 = vadd.f32 %v1953, %v1961
    %v2025 = vadd.f32 %v1954, %v1961
    %v2026 = vadd.f32 %v1955, %v1961
    %v2027 = vmax.f32 %v1963, 0.0
    %v2028 = vmax.f32 %v1964, 0.0
    %v2029 = vmax.f32 %v1965, 0.0
    %v2030 = vmax.f32 %v1966, 0.0
    %v2031 = vmax.f32 %v1967, 0.0
    %v2032 = vmax.f32 %v1968, 0.0
    %v2033 = vmax.f32 %v1969, 0.0
    %v2034 = vmax.f32 %v1970, 0.0
    %v2035 = vmax.f32 %v1971, 0.0
    %v2036 = vmax.f32 %v1972, 0.0
    %v2037 = vmax.f32 %v1973, 0.0
    %v2038 = vmax.f32 %v1974, 0.0
    %v2039 = vmax.f32 %v1975, 0.0
    %v2040 = vmax.f32 %v1976, 0.0
    %v2041 = vmax.f32 %v1977, 0.0
    %v2042 = vmax.f32 %v1978, 0.0
    %v2043 = vmax.f32 %v1979, 0.0
    %v2044 = vmax.f32 %v1980, 0.0
    %v2045 = vmax.f32 %v1981, 0.0
    %v2046 = vmax.f32 %v1982, 0.0
    %v2047 = vmax.f32 %v1983, 0.0
    %v2048 = vmax.f32 %v1984, 0.0
    %v2049 = vmax.f32 %v1985, 0.0
    %v2050 = vmax.f32 %v1986, 0.0
    %v2051 = vmax.f32 %v1987, 0.0
    %v2052 = vmax.f32 %v1988, 0.0
    %v2053 = vmax.f32 %v1989, 0.0
    %v2054 = vmax.f32 %v1990, 0.0
    %v2055 = vmax.f32 %v1991, 0.0
    %v2056 = vmax.f32 %v1992, 0.0
    %v2057 = vmax.f32 %v1993, 0.0
    %v2058 = vmax.f32 %v1994, 0.0
    %v2059 = vmax.f32 %v1995, 0.0
    %v2060 = vmax.f32 %v1996, 0.0
    %v2061 = vmax.f32 %v1997, 0.0
    %v2062 = vmax.f32 %v1998, 0.0
    %v2063 = vmax.f32 %v1999, 0.0
    %v2064 = vmax.f32 %v2000, 0.0
    %v2065 = vmax.f32 %v2001, 0.0
    %v2066 = vmax.f32 %v2002, 0.0
    %v2067 = vmax.f32 %v2003, 0.0
    %v2068 = vmax.f32 %v2004, 0.0
    %v2069 = vmax.f32 %v2005, 0.0
    %v2070 = vmax.f32 %v2006, 0.0
    %v2071 = vmax.f32 %v2007, 0.0
    %v2072 = vmax.f32 %v2008, 0.0
    %v2073 = vmax.f32 %v2009, 0.0
    %v2074 = vmax.f32 %v2010, 0.0
    %v2075 = vmax.f32 %v2011, 0.0
    %v2076 = vmax.f32 %v2012, 0.0
    %v2077 = vmax.f32 %v2013, 0.0
    %v2078 = vmax.f32 %v2014, 0.0
    %v2079 = vmax.f32 %v2015, 0.0
    %v2080 = vmax.f32 %v2016, 0.0
    %v2081 = vmax.f32 %v2017, 0.0
    %v2082 = vmax.f32 %v2018, 0.0
    %v2083 = vmax.f32 %v2019, 0.0
    %v2084 = vmax.f32 %v2020, 0.0
    %v2085 = vmax.f32 %v2021, 0.0
    %v2086 = vmax.f32 %v2022, 0.0
    %v2087 = vmax.f32 %v2023, 0.0
    %v2088 = vmax.f32 %v2024, 0.0
    %v2089 = vmax.f32 %v2025, 0.0
    %v2090 = vmax.f32 %v2026, 0.0
    %v2091 = vpack.c.bf16 %v2028, %v2027
    %v2092 = vpack.c.bf16 %v2030, %v2029
    %v2093 = vpack.c.bf16 %v2032, %v2031
    %v2094 = vpack.c.bf16 %v2034, %v2033
    %v2095 = vpack.c.bf16 %v2036, %v2035
    %v2096 = vpack.c.bf16 %v2038, %v2037
    %v2097 = vpack.c.bf16 %v2040, %v2039
    %v2098 = vpack.c.bf16 %v2042, %v2041
    %v2099 = vpack.c.bf16 %v2044, %v2043
    %v2100 = vpack.c.bf16 %v2046, %v2045
    %v2101 = vpack.c.bf16 %v2048, %v2047
    %v2102 = vpack.c.bf16 %v2050, %v2049
    %v2103 = vpack.c.bf16 %v2052, %v2051
    %v2104 = vpack.c.bf16 %v2054, %v2053
    %v2105 = vpack.c.bf16 %v2056, %v2055
    %v2106 = vpack.c.bf16 %v2058, %v2057
    %v2107 = vpack.c.bf16 %v2060, %v2059
    %v2108 = vpack.c.bf16 %v2062, %v2061
    %v2109 = vpack.c.bf16 %v2064, %v2063
    %v2110 = vpack.c.bf16 %v2066, %v2065
    %v2111 = vpack.c.bf16 %v2068, %v2067
    %v2112 = vpack.c.bf16 %v2070, %v2069
    %v2113 = vpack.c.bf16 %v2072, %v2071
    %v2114 = vpack.c.bf16 %v2074, %v2073
    %v2115 = vpack.c.bf16 %v2076, %v2075
    %v2116 = vpack.c.bf16 %v2078, %v2077
    %v2117 = vpack.c.bf16 %v2080, %v2079
    %v2118 = vpack.c.bf16 %v2082, %v2081
    %v2119 = vpack.c.bf16 %v2084, %v2083
    %v2120 = vpack.c.bf16 %v2086, %v2085
    %v2121 = vpack.c.bf16 %v2088, %v2087
    %v2122 = vpack.c.bf16 %v2090, %v2089
    %v2123 = vld [vmem:[%s9] sm:$0xf]
    %v2124 = vld [vmem:[%s9 + $0x4] sm:$0xf]
    %v2125 = vld [vmem:[%s9 + $0x8] sm:$0xf]
    %v2126 = vld [vmem:[%s9 + $0xc] sm:$0xf]
    %v2127 = vld [vmem:[%s9 + $0x10] sm:$0xf]
    %v2128 = vld [vmem:[%s9 + $0x14] sm:$0xf]
    %v2129 = vld [vmem:[%s9 + $0x18] sm:$0xf]
    %v2130 = vld [vmem:[%s9 + $0x1c] sm:$0xf]
    %v2131 = vld [vmem:[%s9 + $0x20] sm:$0xf]
    %v2132 = vld [vmem:[%s9 + $0x24] sm:$0xf]
    %v2133 = vld [vmem:[%s9 + $0x28] sm:$0xf]
    %v2134 = vld [vmem:[%s9 + $0x2c] sm:$0xf]
    %v2135 = vld [vmem:[%s9 + $0x30] sm:$0xf]
    %v2136 = vld [vmem:[%s9 + $0x34] sm:$0xf]
    %v2137 = vld [vmem:[%s9 + $0x38] sm:$0xf]
    %v2138 = vld [vmem:[%s9 + $0x3c] sm:$0xf]
    %v2155 = vunpack.c.l.b16 %v2123
    %v2156 = vunpack.c.l.b16 %v2124
    %v2157 = vunpack.c.l.b16 %v2125
    %v2158 = vunpack.c.l.b16 %v2126
    %v2159 = vunpack.c.l.b16 %v2127
    %v2160 = vunpack.c.l.b16 %v2128
    %v2161 = vunpack.c.l.b16 %v2129
    %v2162 = vunpack.c.l.b16 %v2130
    %v2163 = vunpack.c.l.b16 %v2131
    %v2164 = vunpack.c.l.b16 %v2132
    %v2165 = vunpack.c.l.b16 %v2133
    %v2166 = vunpack.c.l.b16 %v2134
    %v2167 = vunpack.c.l.b16 %v2135
    %v2168 = vunpack.c.l.b16 %v2136
    %v2169 = vunpack.c.l.b16 %v2137
    %v2170 = vunpack.c.l.b16 %v2138
    %v2171 = vpack.c.b16 %v2156, %v2155
    %v2172 = vpack.c.b16 %v2158, %v2157
    %v2173 = vpack.c.b16 %v2160, %v2159
    %v2174 = vpack.c.b16 %v2162, %v2161
    %v2175 = vpack.c.b16 %v2164, %v2163
    %v2176 = vpack.c.b16 %v2166, %v2165
    %v2177 = vpack.c.b16 %v2168, %v2167
    %v2178 = vpack.c.b16 %v2170, %v2169
    %2187 = vmatprep.subr.bf16.mxu0 0
    %2188 = vmatpush1.bf16.msra.mxu0 %v2171
    %2189 = vmatprep.subr.bf16.mxu0 0
    %2190 = vmatpush1.bf16.msra.mxu0 %v2172
    %2191 = vmatprep.subr.bf16.mxu0 0
    %2192 = vmatpush1.bf16.msra.mxu0 %v2173
    %2193 = vmatprep.subr.bf16.mxu0 0
    %2194 = vmatpush1.bf16.msra.mxu0 %v2174
    %2195 = vmatprep.subr.bf16.mxu0 0
    %2196 = vmatpush1.bf16.msra.mxu0 %v2175
    %2197 = vmatprep.subr.bf16.mxu0 0
    %2198 = vmatpush1.bf16.msra.mxu0 %v2176
    %2199 = vmatprep.subr.bf16.mxu0 0
    %2200 = vmatpush1.bf16.msra.mxu0 %v2177
    %2201 = vmatprep.subr.bf16.mxu0 0
    %2202 = vmatpush1.bf16.msra.mxu0 %v2178
    %2203 = vmatprep.subr.bf16.mxu0 0
    %2204 = vmatpush1.bf16.msra.mxu0 0
    %2205 = vmatprep.subr.bf16.mxu0 0
    %2206 = vmatpush1.bf16.msra.mxu0 0
    %2207 = vmatprep.subr.bf16.mxu0 0
    %2208 = vmatpush1.bf16.msra.mxu0 0
    %2209 = vmatprep.subr.bf16.mxu0 0
    %2210 = vmatpush1.bf16.msra.mxu0 0
    %2211 = vmatprep.subr.bf16.mxu0 0
    %2212 = vmatpush1.bf16.msra.mxu0 0
    %2213 = vmatprep.subr.bf16.mxu0 0
    %2214 = vmatpush1.bf16.msra.mxu0 0
    %2215 = vmatprep.subr.bf16.mxu0 0
    %2216 = vmatpush1.bf16.msra.mxu0 0
    %2217 = vmatprep.subr.bf16.mxu0 0
    %2218 = vmatpush1.bf16.msra.mxu0 0
    %2219 = vmatprep.mubr.bf16.mxu0 0
    %2220 = vmatmul.mubr.bf16.gmra.mrb[0].mxu0 %v2091
    %v2221 = vpop.f32.mrb[0].mxu0
    %v2222 = vadd.f32 0.0, %v2221
    %v2223 = vpop.f32.mrb[0].mxu0
    %v2224 = vpop.f32.mrb[0].mxu0
    %v2225 = vadd.f32 0.0, %v2224
    %v2226 = vpop.f32.mrb[0].mxu0
    %2227 = vmatprep.mubr.bf16.mxu0 0
    %2228 = vmatmul.mubr.bf16.gmra.mrb[0].mxu0 %v2092
    %v2229 = vpop.f32.mrb[0].mxu0
    %v2230 = vadd.f32 0.0, %v2229
    %v2231 = vpop.f32.mrb[0].mxu0
    %v2232 = vpop.f32.mrb[0].mxu0
    %v2233 = vadd.f32 0.0, %v2232
    %v2234 = vpop.f32.mrb[0].mxu0
    %2235 = vmatprep.mubr.bf16.mxu0 0
    %2236 = vmatmul.mubr.bf16.gmra.mrb[0].mxu0 %v2093
    %v2237 = vpop.f32.mrb[0].mxu0
    %v2238 = vadd.f32 0.0, %v2237
    %v2239 = vpop.f32.mrb[0].mxu0
    %v2240 = vpop.f32.mrb[0].mxu0
    %v2241 = vadd.f32 0.0, %v2240
    %v2242 = vpop.f32.mrb[0].mxu0
    %2243 = vmatprep.mubr.bf16.mxu0 0
    %2244 = vmatmul.mubr.bf16.gmra.mrb[0].mxu0 %v2094
    %v2245 = vpop.f32.mrb[0].mxu0
    %v2246 = vadd.f32 0.0, %v2245
    %v2247 = vpop.f32.mrb[0].mxu0
    %v2248 = vpop.f32.mrb[0].mxu0
    %v2249 = vadd.f32 0.0, %v2248
    %v2250 = vpop.f32.mrb[0].mxu0
    %2251 = vmatprep.mubr.bf16.mxu0 0
    %2252 = vmatmul.mubr.bf16.gmra.mrb[0].mxu0 %v2095
    %v2253 = vpop.f32.mrb[0].mxu0
    %v2254 = vadd.f32 0.0, %v2253
    %v2255 = vpop.f32.mrb[0].mxu0
    %v2256 = vpop.f32.mrb[0].mxu0
    %v2257 = vadd.f32 0.0, %v2256
    %v2258 = vpop.f32.mrb[0].mxu0
    %2259 = vmatprep.mubr.bf16.mxu0 0
    %2260 = vmatmul.mubr.bf16.gmra.mrb[0].mxu0 %v2096
    %v2261 = vpop.f32.mrb[0].mxu0
    %v2262 = vadd.f32 0.0, %v2261
    %v2263 = vpop.f32.mrb[0].mxu0
    %v2264 = vpop.f32.mrb[0].mxu0
    %v2265 = vadd.f32 0.0, %v2264
    %v2266 = vpop.f32.mrb[0].mxu0
    %2267 = vmatprep.mubr.bf16.mxu0 0
    %2268 = vmatmul.mubr.bf16.gmra.mrb[0].mxu0 %v2097
    %v2269 = vpop.f32.mrb[0].mxu0
    %v2270 = vadd.f32 0.0, %v2269
    %v2271 = vpop.f32.mrb[0].mxu0
    %v2272 = vpop.f32.mrb[0].mxu0
    %v2273 = vadd.f32 0.0, %v2272
    %v2274 = vpop.f32.mrb[0].mxu0
    %2275 = vmatprep.mubr.bf16.mxu0 0
    %2276 = vmatmul.mubr.bf16.gmra.mrb[0].mxu0 %v2098
    %v2277 = vpop.f32.mrb[0].mxu0
    %v2278 = vadd.f32 0.0, %v2277
    %v2279 = vpop.f32.mrb[0].mxu0
    %v2280 = vpop.f32.mrb[0].mxu0
    %v2281 = vadd.f32 0.0, %v2280
    %v2282 = vpop.f32.mrb[0].mxu0
    %2283 = vmatprep.mubr.bf16.mxu0 0
    %2284 = vmatmul.mubr.bf16.gmra.mrb[0].mxu0 %v2099
    %v2285 = vpop.f32.mrb[0].mxu0
    %v2286 = vadd.f32 0.0, %v2285
    %v2287 = vpop.f32.mrb[0].mxu0
    %v2288 = vpop.f32.mrb[0].mxu0
    %v2289 = vadd.f32 0.0, %v2288
    %v2290 = vpop.f32.mrb[0].mxu0
    %2291 = vmatprep.mubr.bf16.mxu0 0
    %2292 = vmatmul.mubr.bf16.gmra.mrb[0].mxu0 %v2100
    %v2293 = vpop.f32.mrb[0].mxu0
    %v2294 = vadd.f32 0.0, %v2293
    %v2295 = vpop.f32.mrb[0].mxu0
    %v2296 = vpop.f32.mrb[0].mxu0
    %v2297 = vadd.f32 0.0, %v2296
    %v2298 = vpop.f32.mrb[0].mxu0
    %2299 = vmatprep.mubr.bf16.mxu0 0
    %2300 = vmatmul.mubr.bf16.gmra.mrb[0].mxu0 %v2101
    %v2301 = vpop.f32.mrb[0].mxu0
    %v2302 = vadd.f32 0.0, %v2301
    %v2303 = vpop.f32.mrb[0].mxu0
    %v2304 = vpop.f32.mrb[0].mxu0
    %v2305 = vadd.f32 0.0, %v2304
    %v2306 = vpop.f32.mrb[0].mxu0
    %2307 = vmatprep.mubr.bf16.mxu0 0
    %2308 = vmatmul.mubr.bf16.gmra.mrb[0].mxu0 %v2102
    %v2309 = vpop.f32.mrb[0].mxu0
    %v2310 = vadd.f32 0.0, %v2309
    %v2311 = vpop.f32.mrb[0].mxu0
    %v2312 = vpop.f32.mrb[0].mxu0
    %v2313 = vadd.f32 0.0, %v2312
    %v2314 = vpop.f32.mrb[0].mxu0
    %2315 = vmatprep.mubr.bf16.mxu0 0
    %2316 = vmatmul.mubr.bf16.gmra.mrb[0].mxu0 %v2103
    %v2317 = vpop.f32.mrb[0].mxu0
    %v2318 = vadd.f32 0.0, %v2317
    %v2319 = vpop.f32.mrb[0].mxu0
    %v2320 = vpop.f32.mrb[0].mxu0
    %v2321 = vadd.f32 0.0, %v2320
    %v2322 = vpop.f32.mrb[0].mxu0
    %2323 = vmatprep.mubr.bf16.mxu0 0
    %2324 = vmatmul.mubr.bf16.gmra.mrb[0].mxu0 %v2104
    %v2325 = vpop.f32.mrb[0].mxu0
    %v2326 = vadd.f32 0.0, %v2325
    %v2327 = vpop.f32.mrb[0].mxu0
    %v2328 = vpop.f32.mrb[0].mxu0
    %v2329 = vadd.f32 0.0, %v2328
    %v2330 = vpop.f32.mrb[0].mxu0
    %2331 = vmatprep.mubr.bf16.mxu0 0
    %2332 = vmatmul.mubr.bf16.gmra.mrb[0].mxu0 %v2105
    %v2333 = vpop.f32.mrb[0].mxu0
    %v2334 = vadd.f32 0.0, %v2333
    %v2335 = vpop.f32.mrb[0].mxu0
    %v2336 = vpop.f32.mrb[0].mxu0
    %v2337 = vadd.f32 0.0, %v2336
    %v2338 = vpop.f32.mrb[0].mxu0
    %2339 = vmatprep.mubr.bf16.mxu0 0
    %2340 = vmatmul.mubr.bf16.gmra.mrb[0].mxu0 %v2106
    %v2341 = vpop.f32.mrb[0].mxu0
    %v2342 = vadd.f32 0.0, %v2341
    %v2343 = vpop.f32.mrb[0].mxu0
    %v2344 = vpop.f32.mrb[0].mxu0
    %v2345 = vadd.f32 0.0, %v2344
    %v2346 = vpop.f32.mrb[0].mxu0
    %2347 = vmatprep.mubr.bf16.mxu0 0
    %2348 = vmatmul.mubr.bf16.gmra.mrb[0].mxu0 %v2107
    %v2349 = vpop.f32.mrb[0].mxu0
    %v2350 = vadd.f32 0.0, %v2349
    %v2351 = vpop.f32.mrb[0].mxu0
    %v2352 = vpop.f32.mrb[0].mxu0
    %v2353 = vadd.f32 0.0, %v2352
    %v2354 = vpop.f32.mrb[0].mxu0
    %2355 = vmatprep.mubr.bf16.mxu0 0
    %2356 = vmatmul.mubr.bf16.gmra.mrb[0].mxu0 %v2108
    %v2357 = vpop.f32.mrb[0].mxu0
    %v2358 = vadd.f32 0.0, %v2357
    %v2359 = vpop.f32.mrb[0].mxu0
    %v2360 = vpop.f32.mrb[0].mxu0
    %v2361 = vadd.f32 0.0, %v2360
    %v2362 = vpop.f32.mrb[0].mxu0
    %2363 = vmatprep.mubr.bf16.mxu0 0
    %2364 = vmatmul.mubr.bf16.gmra.mrb[0].mxu0 %v2109
    %v2365 = vpop.f32.mrb[0].mxu0
    %v2366 = vadd.f32 0.0, %v2365
    %v2367 = vpop.f32.mrb[0].mxu0
    %v2368 = vpop.f32.mrb[0].mxu0
    %v2369 = vadd.f32 0.0, %v2368
    %v2370 = vpop.f32.mrb[0].mxu0
    %2371 = vmatprep.mubr.bf16.mxu0 0
    %2372 = vmatmul.mubr.bf16.gmra.mrb[0].mxu0 %v2110
    %v2373 = vpop.f32.mrb[0].mxu0
    %v2374 = vadd.f32 0.0, %v2373
    %v2375 = vpop.f32.mrb[0].mxu0
    %v2376 = vpop.f32.mrb[0].mxu0
    %v2377 = vadd.f32 0.0, %v2376
    %v2378 = vpop.f32.mrb[0].mxu0
    %2379 = vmatprep.mubr.bf16.mxu0 0
    %2380 = vmatmul.mubr.bf16.gmra.mrb[0].mxu0 %v2111
    %v2381 = vpop.f32.mrb[0].mxu0
    %v2382 = vadd.f32 0.0, %v2381
    %v2383 = vpop.f32.mrb[0].mxu0
    %v2384 = vpop.f32.mrb[0].mxu0
    %v2385 = vadd.f32 0.0, %v2384
    %v2386 = vpop.f32.mrb[0].mxu0
    %2387 = vmatprep.mubr.bf16.mxu0 0
    %2388 = vmatmul.mubr.bf16.gmra.mrb[0].mxu0 %v2112
    %v2389 = vpop.f32.mrb[0].mxu0
    %v2390 = vadd.f32 0.0, %v2389
    %v2391 = vpop.f32.mrb[0].mxu0
    %v2392 = vpop.f32.mrb[0].mxu0
    %v2393 = vadd.f32 0.0, %v2392
    %v2394 = vpop.f32.mrb[0].mxu0
    %2395 = vmatprep.mubr.bf16.mxu0 0
    %2396 = vmatmul.mubr.bf16.gmra.mrb[0].mxu0 %v2113
    %v2397 = vpop.f32.mrb[0].mxu0
    %v2398 = vadd.f32 0.0, %v2397
    %v2399 = vpop.f32.mrb[0].mxu0
    %v2400 = vpop.f32.mrb[0].mxu0
    %v2401 = vadd.f32 0.0, %v2400
    %v2402 = vpop.f32.mrb[0].mxu0
    %2403 = vmatprep.mubr.bf16.mxu0 0
    %2404 = vmatmul.mubr.bf16.gmra.mrb[0].mxu0 %v2114
    %v2405 = vpop.f32.mrb[0].mxu0
    %v2406 = vadd.f32 0.0, %v2405
    %v2407 = vpop.f32.mrb[0].mxu0
    %v2408 = vpop.f32.mrb[0].mxu0
    %v2409 = vadd.f32 0.0, %v2408
    %v2410 = vpop.f32.mrb[0].mxu0
    %2411 = vmatprep.mubr.bf16.mxu0 0
    %2412 = vmatmul.mubr.bf16.gmra.mrb[0].mxu0 %v2115
    %v2413 = vpop.f32.mrb[0].mxu0
    %v2414 = vadd.f32 0.0, %v2413
    %v2415 = vpop.f32.mrb[0].mxu0
    %v2416 = vpop.f32.mrb[0].mxu0
    %v2417 = vadd.f32 0.0, %v2416
    %v2418 = vpop.f32.mrb[0].mxu0
    %2419 = vmatprep.mubr.bf16.mxu0 0
    %2420 = vmatmul.mubr.bf16.gmra.mrb[0].mxu0 %v2116
    %v2421 = vpop.f32.mrb[0].mxu0
    %v2422 = vadd.f32 0.0, %v2421
    %v2423 = vpop.f32.mrb[0].mxu0
    %v2424 = vpop.f32.mrb[0].mxu0
    %v2425 = vadd.f32 0.0, %v2424
    %v2426 = vpop.f32.mrb[0].mxu0
    %2427 = vmatprep.mubr.bf16.mxu0 0
    %2428 = vmatmul.mubr.bf16.gmra.mrb[0].mxu0 %v2117
    %v2429 = vpop.f32.mrb[0].mxu0
    %v2430 = vadd.f32 0.0, %v2429
    %v2431 = vpop.f32.mrb[0].mxu0
    %v2432 = vpop.f32.mrb[0].mxu0
    %v2433 = vadd.f32 0.0, %v2432
    %v2434 = vpop.f32.mrb[0].mxu0
    %2435 = vmatprep.mubr.bf16.mxu0 0
    %2436 = vmatmul.mubr.bf16.gmra.mrb[0].mxu0 %v2118
    %v2437 = vpop.f32.mrb[0].mxu0
    %v2438 = vadd.f32 0.0, %v2437
    %v2439 = vpop.f32.mrb[0].mxu0
    %v2440 = vpop.f32.mrb[0].mxu0
    %v2441 = vadd.f32 0.0, %v2440
    %v2442 = vpop.f32.mrb[0].mxu0
    %2443 = vmatprep.mubr.bf16.mxu0 0
    %2444 = vmatmul.mubr.bf16.gmra.mrb[0].mxu0 %v2119
    %v2445 = vpop.f32.mrb[0].mxu0
    %v2446 = vadd.f32 0.0, %v2445
    %v2447 = vpop.f32.mrb[0].mxu0
    %v2448 = vpop.f32.mrb[0].mxu0
    %v2449 = vadd.f32 0.0, %v2448
    %v2450 = vpop.f32.mrb[0].mxu0
    %2451 = vmatprep.mubr.bf16.mxu0 0
    %2452 = vmatmul.mubr.bf16.gmra.mrb[0].mxu0 %v2120
    %v2453 = vpop.f32.mrb[0].mxu0
    %v2454 = vadd.f32 0.0, %v2453
    %v2455 = vpop.f32.mrb[0].mxu0
    %v2456 = vpop.f32.mrb[0].mxu0
    %v2457 = vadd.f32 0.0, %v2456
    %v2458 = vpop.f32.mrb[0].mxu0
    %2459 = vmatprep.mubr.bf16.mxu0 0
    %2460 = vmatmul.mubr.bf16.gmra.mrb[0].mxu0 %v2121
    %v2461 = vpop.f32.mrb[0].mxu0
    %v2462 = vadd.f32 0.0, %v2461
    %v2463 = vpop.f32.mrb[0].mxu0
    %v2464 = vpop.f32.mrb[0].mxu0
    %v2465 = vadd.f32 0.0, %v2464
    %v2466 = vpop.f32.mrb[0].mxu0
    %2467 = vmatprep.mubr.bf16.mxu0 0
    %2468 = vmatmul.mubr.bf16.gmra.mrb[0].mxu0 %v2122
    %v2469 = vpop.f32.mrb[0].mxu0
    %v2470 = vadd.f32 0.0, %v2469
    %v2471 = vpop.f32.mrb[0].mxu0
    %v2472 = vpop.f32.mrb[0].mxu0
    %v2473 = vadd.f32 0.0, %v2472
    %v2474 = vpop.f32.mrb[0].mxu0
    %2475 = vdwg.mxu0
    %v2476 = vld [vmem:[%s10] sm:$0x1]
    %v2478 = vlaneseq
    %v2479 = vshrl.u32 %v2478, 7
    %v2480 = vsub.s32 0, %v2479
    %v2481 = vrot.slane %v2476, %v2480
    %v2483 = vmul.f32 %v2222, %v2481
    %v2484 = vmul.f32 %v2225, %v2481
    %v2485 = vmul.f32 %v2230, %v2481
    %v2486 = vmul.f32 %v2233, %v2481
    %v2487 = vmul.f32 %v2238, %v2481
    %v2488 = vmul.f32 %v2241, %v2481
    %v2489 = vmul.f32 %v2246, %v2481
    %v2490 = vmul.f32 %v2249, %v2481
    %v2491 = vmul.f32 %v2254, %v2481
    %v2492 = vmul.f32 %v2257, %v2481
    %v2493 = vmul.f32 %v2262, %v2481
    %v2494 = vmul.f32 %v2265, %v2481
    %v2495 = vmul.f32 %v2270, %v2481
    %v2496 = vmul.f32 %v2273, %v2481
    %v2497 = vmul.f32 %v2278, %v2481
    %v2498 = vmul.f32 %v2281, %v2481
    %v2499 = vmul.f32 %v2286, %v2481
    %v2500 = vmul.f32 %v2289, %v2481
    %v2501 = vmul.f32 %v2294, %v2481
    %v2502 = vmul.f32 %v2297, %v2481
    %v2503 = vmul.f32 %v2302, %v2481
    %v2504 = vmul.f32 %v2305, %v2481
    %v2505 = vmul.f32 %v2310, %v2481
    %v2506 = vmul.f32 %v2313, %v2481
    %v2507 = vmul.f32 %v2318, %v2481
    %v2508 = vmul.f32 %v2321, %v2481
    %v2509 = vmul.f32 %v2326, %v2481
    %v2510 = vmul.f32 %v2329, %v2481
    %v2511 = vmul.f32 %v2334, %v2481
    %v2512 = vmul.f32 %v2337, %v2481
    %v2513 = vmul.f32 %v2342, %v2481
    %v2514 = vmul.f32 %v2345, %v2481
    %v2515 = vmul.f32 %v2350, %v2481
    %v2516 = vmul.f32 %v2353, %v2481
    %v2517 = vmul.f32 %v2358, %v2481
    %v2518 = vmul.f32 %v2361, %v2481
    %v2519 = vmul.f32 %v2366, %v2481
    %v2520 = vmul.f32 %v2369, %v2481
    %v2521 = vmul.f32 %v2374, %v2481
    %v2522 = vmul.f32 %v2377, %v2481
    %v2523 = vmul.f32 %v2382, %v2481
    %v2524 = vmul.f32 %v2385, %v2481
    %v2525 = vmul.f32 %v2390, %v2481
    %v2526 = vmul.f32 %v2393, %v2481
    %v2527 = vmul.f32 %v2398, %v2481
    %v2528 = vmul.f32 %v2401, %v2481
    %v2529 = vmul.f32 %v2406, %v2481
    %v2530 = vmul.f32 %v2409, %v2481
    %v2531 = vmul.f32 %v2414, %v2481
    %v2532 = vmul.f32 %v2417, %v2481
    %v2533 = vmul.f32 %v2422, %v2481
    %v2534 = vmul.f32 %v2425, %v2481
    %v2535 = vmul.f32 %v2430, %v2481
    %v2536 = vmul.f32 %v2433, %v2481
    %v2537 = vmul.f32 %v2438, %v2481
    %v2538 = vmul.f32 %v2441, %v2481
    %v2539 = vmul.f32 %v2446, %v2481
    %v2540 = vmul.f32 %v2449, %v2481
    %v2541 = vmul.f32 %v2454, %v2481
    %v2542 = vmul.f32 %v2457, %v2481
    %v2543 = vmul.f32 %v2462, %v2481
    %v2544 = vmul.f32 %v2465, %v2481
    %v2545 = vmul.f32 %v2470, %v2481
    %v2546 = vmul.f32 %v2473, %v2481
    %v2547 = vld [vmem:[%s11] sm:$0x1]
    %v2549 = vlaneseq
    %v2550 = vshrl.u32 %v2549, 7
    %v2551 = vsub.s32 0, %v2550
    %v2552 = vrot.slane %v2547, %v2551
    %v2554 = vadd.f32 %v2483, %v2552
    %v2555 = vadd.f32 %v2484, %v2552
    %v2556 = vadd.f32 %v2485, %v2552
    %v2557 = vadd.f32 %v2486, %v2552
    %v2558 = vadd.f32 %v2487, %v2552
    %v2559 = vadd.f32 %v2488, %v2552
    %v2560 = vadd.f32 %v2489, %v2552
    %v2561 = vadd.f32 %v2490, %v2552
    %v2562 = vadd.f32 %v2491, %v2552
    %v2563 = vadd.f32 %v2492, %v2552
    %v2564 = vadd.f32 %v2493, %v2552
    %v2565 = vadd.f32 %v2494, %v2552
    %v2566 = vadd.f32 %v2495, %v2552
    %v2567 = vadd.f32 %v2496, %v2552
    %v2568 = vadd.f32 %v2497, %v2552
    %v2569 = vadd.f32 %v2498, %v2552
    %v2570 = vadd.f32 %v2499, %v2552
    %v2571 = vadd.f32 %v2500, %v2552
    %v2572 = vadd.f32 %v2501, %v2552
    %v2573 = vadd.f32 %v2502, %v2552
    %v2574 = vadd.f32 %v2503, %v2552
    %v2575 = vadd.f32 %v2504, %v2552
    %v2576 = vadd.f32 %v2505, %v2552
    %v2577 = vadd.f32 %v2506, %v2552
    %v2578 = vadd.f32 %v2507, %v2552
    %v2579 = vadd.f32 %v2508, %v2552
    %v2580 = vadd.f32 %v2509, %v2552
    %v2581 = vadd.f32 %v2510, %v2552
    %v2582 = vadd.f32 %v2511, %v2552
    %v2583 = vadd.f32 %v2512, %v2552
    %v2584 = vadd.f32 %v2513, %v2552
    %v2585 = vadd.f32 %v2514, %v2552
    %v2586 = vadd.f32 %v2515, %v2552
    %v2587 = vadd.f32 %v2516, %v2552
    %v2588 = vadd.f32 %v2517, %v2552
    %v2589 = vadd.f32 %v2518, %v2552
    %v2590 = vadd.f32 %v2519, %v2552
    %v2591 = vadd.f32 %v2520, %v2552
    %v2592 = vadd.f32 %v2521, %v2552
    %v2593 = vadd.f32 %v2522, %v2552
    %v2594 = vadd.f32 %v2523, %v2552
    %v2595 = vadd.f32 %v2524, %v2552
    %v2596 = vadd.f32 %v2525, %v2552
    %v2597 = vadd.f32 %v2526, %v2552
    %v2598 = vadd.f32 %v2527, %v2552
    %v2599 = vadd.f32 %v2528, %v2552
    %v2600 = vadd.f32 %v2529, %v2552
    %v2601 = vadd.f32 %v2530, %v2552
    %v2602 = vadd.f32 %v2531, %v2552
    %v2603 = vadd.f32 %v2532, %v2552
    %v2604 = vadd.f32 %v2533, %v2552
    %v2605 = vadd.f32 %v2534, %v2552
    %v2606 = vadd.f32 %v2535, %v2552
    %v2607 = vadd.f32 %v2536, %v2552
    %v2608 = vadd.f32 %v2537, %v2552
    %v2609 = vadd.f32 %v2538, %v2552
    %v2610 = vadd.f32 %v2539, %v2552
    %v2611 = vadd.f32 %v2540, %v2552
    %v2612 = vadd.f32 %v2541, %v2552
    %v2613 = vadd.f32 %v2542, %v2552
    %v2614 = vadd.f32 %v2543, %v2552
    %v2615 = vadd.f32 %v2544, %v2552
    %v2616 = vadd.f32 %v2545, %v2552
    %v2617 = vadd.f32 %v2546, %v2552
    %v2618 = vmax.f32 %v2554, 0.0
    %v2619 = vmax.f32 %v2555, 0.0
    %v2620 = vmax.f32 %v2556, 0.0
    %v2621 = vmax.f32 %v2557, 0.0
    %v2622 = vmax.f32 %v2558, 0.0
    %v2623 = vmax.f32 %v2559, 0.0
    %v2624 = vmax.f32 %v2560, 0.0
    %v2625 = vmax.f32 %v2561, 0.0
    %v2626 = vmax.f32 %v2562, 0.0
    %v2627 = vmax.f32 %v2563, 0.0
    %v2628 = vmax.f32 %v2564, 0.0
    %v2629 = vmax.f32 %v2565, 0.0
    %v2630 = vmax.f32 %v2566, 0.0
    %v2631 = vmax.f32 %v2567, 0.0
    %v2632 = vmax.f32 %v2568, 0.0
    %v2633 = vmax.f32 %v2569, 0.0
    %v2634 = vmax.f32 %v2570, 0.0
    %v2635 = vmax.f32 %v2571, 0.0
    %v2636 = vmax.f32 %v2572, 0.0
    %v2637 = vmax.f32 %v2573, 0.0
    %v2638 = vmax.f32 %v2574, 0.0
    %v2639 = vmax.f32 %v2575, 0.0
    %v2640 = vmax.f32 %v2576, 0.0
    %v2641 = vmax.f32 %v2577, 0.0
    %v2642 = vmax.f32 %v2578, 0.0
    %v2643 = vmax.f32 %v2579, 0.0
    %v2644 = vmax.f32 %v2580, 0.0
    %v2645 = vmax.f32 %v2581, 0.0
    %v2646 = vmax.f32 %v2582, 0.0
    %v2647 = vmax.f32 %v2583, 0.0
    %v2648 = vmax.f32 %v2584, 0.0
    %v2649 = vmax.f32 %v2585, 0.0
    %v2650 = vmax.f32 %v2586, 0.0
    %v2651 = vmax.f32 %v2587, 0.0
    %v2652 = vmax.f32 %v2588, 0.0
    %v2653 = vmax.f32 %v2589, 0.0
    %v2654 = vmax.f32 %v2590, 0.0
    %v2655 = vmax.f32 %v2591, 0.0
    %v2656 = vmax.f32 %v2592, 0.0
    %v2657 = vmax.f32 %v2593, 0.0
    %v2658 = vmax.f32 %v2594, 0.0
    %v2659 = vmax.f32 %v2595, 0.0
    %v2660 = vmax.f32 %v2596, 0.0
    %v2661 = vmax.f32 %v2597, 0.0
    %v2662 = vmax.f32 %v2598, 0.0
    %v2663 = vmax.f32 %v2599, 0.0
    %v2664 = vmax.f32 %v2600, 0.0
    %v2665 = vmax.f32 %v2601, 0.0
    %v2666 = vmax.f32 %v2602, 0.0
    %v2667 = vmax.f32 %v2603, 0.0
    %v2668 = vmax.f32 %v2604, 0.0
    %v2669 = vmax.f32 %v2605, 0.0
    %v2670 = vmax.f32 %v2606, 0.0
    %v2671 = vmax.f32 %v2607, 0.0
    %v2672 = vmax.f32 %v2608, 0.0
    %v2673 = vmax.f32 %v2609, 0.0
    %v2674 = vmax.f32 %v2610, 0.0
    %v2675 = vmax.f32 %v2611, 0.0
    %v2676 = vmax.f32 %v2612, 0.0
    %v2677 = vmax.f32 %v2613, 0.0
    %v2678 = vmax.f32 %v2614, 0.0
    %v2679 = vmax.f32 %v2615, 0.0
    %v2680 = vmax.f32 %v2616, 0.0
    %v2681 = vmax.f32 %v2617, 0.0
    %2682 = vst [vmem:[#allocation2] sm:$0xff] %v2618
    %2683 = vst [vmem:[#allocation2 + $0x8] sm:$0xff] %v2619
    %2684 = vst [vmem:[#allocation2 + $0x10] sm:$0xff] %v2620
    %2685 = vst [vmem:[#allocation2 + $0x18] sm:$0xff] %v2621
    %2686 = vst [vmem:[#allocation2 + $0x20] sm:$0xff] %v2622
    %2687 = vst [vmem:[#allocation2 + $0x28] sm:$0xff] %v2623
    %2688 = vst [vmem:[#allocation2 + $0x30] sm:$0xff] %v2624
    %2689 = vst [vmem:[#allocation2 + $0x38] sm:$0xff] %v2625
    %2690 = vst [vmem:[#allocation2 + $0x40] sm:$0xff] %v2626
    %2691 = vst [vmem:[#allocation2 + $0x48] sm:$0xff] %v2627
    %2692 = vst [vmem:[#allocation2 + $0x50] sm:$0xff] %v2628
    %2693 = vst [vmem:[#allocation2 + $0x58] sm:$0xff] %v2629
    %2694 = vst [vmem:[#allocation2 + $0x60] sm:$0xff] %v2630
    %2695 = vst [vmem:[#allocation2 + $0x68] sm:$0xff] %v2631
    %2696 = vst [vmem:[#allocation2 + $0x70] sm:$0xff] %v2632
    %2697 = vst [vmem:[#allocation2 + $0x78] sm:$0xff] %v2633
    %2698 = vst [vmem:[#allocation2 + $0x80] sm:$0xff] %v2634
    %2699 = vst [vmem:[#allocation2 + $0x88] sm:$0xff] %v2635
    %2700 = vst [vmem:[#allocation2 + $0x90] sm:$0xff] %v2636
    %2701 = vst [vmem:[#allocation2 + $0x98] sm:$0xff] %v2637
    %2702 = vst [vmem:[#allocation2 + $0xa0] sm:$0xff] %v2638
    %2703 = vst [vmem:[#allocation2 + $0xa8] sm:$0xff] %v2639
    %2704 = vst [vmem:[#allocation2 + $0xb0] sm:$0xff] %v2640
    %2705 = vst [vmem:[#allocation2 + $0xb8] sm:$0xff] %v2641
    %2706 = vst [vmem:[#allocation2 + $0xc0] sm:$0xff] %v2642
    %2707 = vst [vmem:[#allocation2 + $0xc8] sm:$0xff] %v2643
    %2708 = vst [vmem:[#allocation2 + $0xd0] sm:$0xff] %v2644
    %2709 = vst [vmem:[#allocation2 + $0xd8] sm:$0xff] %v2645
    %2710 = vst [vmem:[#allocation2 + $0xe0] sm:$0xff] %v2646
    %2711 = vst [vmem:[#allocation2 + $0xe8] sm:$0xff] %v2647
    %2712 = vst [vmem:[#allocation2 + $0xf0] sm:$0xff] %v2648
    %2713 = vst [vmem:[#allocation2 + $0xf8] sm:$0xff] %v2649
    %2714 = vst [vmem:[#allocation2 + $0x100] sm:$0xff] %v2650
    %2715 = vst [vmem:[#allocation2 + $0x108] sm:$0xff] %v2651
    %2716 = vst [vmem:[#allocation2 + $0x110] sm:$0xff] %v2652
    %2717 = vst [vmem:[#allocation2 + $0x118] sm:$0xff] %v2653
    %2718 = vst [vmem:[#allocation2 + $0x120] sm:$0xff] %v2654
    %2719 = vst [vmem:[#allocation2 + $0x128] sm:$0xff] %v2655
    %2720 = vst [vmem:[#allocation2 + $0x130] sm:$0xff] %v2656
    %2721 = vst [vmem:[#allocation2 + $0x138] sm:$0xff] %v2657
    %2722 = vst [vmem:[#allocation2 + $0x140] sm:$0xff] %v2658
    %2723 = vst [vmem:[#allocation2 + $0x148] sm:$0xff] %v2659
    %2724 = vst [vmem:[#allocation2 + $0x150] sm:$0xff] %v2660
    %2725 = vst [vmem:[#allocation2 + $0x158] sm:$0xff] %v2661
    %2726 = vst [vmem:[#allocation2 + $0x160] sm:$0xff] %v2662
    %2727 = vst [vmem:[#allocation2 + $0x168] sm:$0xff] %v2663
    %2728 = vst [vmem:[#allocation2 + $0x170] sm:$0xff] %v2664
    %2729 = vst [vmem:[#allocation2 + $0x178] sm:$0xff] %v2665
    %2730 = vst [vmem:[#allocation2 + $0x180] sm:$0xff] %v2666
    %2731 = vst [vmem:[#allocation2 + $0x188] sm:$0xff] %v2667
    %2732 = vst [vmem:[#allocation2 + $0x190] sm:$0xff] %v2668
    %2733 = vst [vmem:[#allocation2 + $0x198] sm:$0xff] %v2669
    %2734 = vst [vmem:[#allocation2 + $0x1a0] sm:$0xff] %v2670
    %2735 = vst [vmem:[#allocation2 + $0x1a8] sm:$0xff] %v2671
    %2736 = vst [vmem:[#allocation2 + $0x1b0] sm:$0xff] %v2672
    %2737 = vst [vmem:[#allocation2 + $0x1b8] sm:$0xff] %v2673
    %2738 = vst [vmem:[#allocation2 + $0x1c0] sm:$0xff] %v2674
    %2739 = vst [vmem:[#allocation2 + $0x1c8] sm:$0xff] %v2675
    %2740 = vst [vmem:[#allocation2 + $0x1d0] sm:$0xff] %v2676
    %2741 = vst [vmem:[#allocation2 + $0x1d8] sm:$0xff] %v2677
    %2742 = vst [vmem:[#allocation2 + $0x1e0] sm:$0xff] %v2678
    %2743 = vst [vmem:[#allocation2 + $0x1e8] sm:$0xff] %v2679
    %2744 = vst [vmem:[#allocation2 + $0x1f0] sm:$0xff] %v2680
    %2745 = vst [vmem:[#allocation2 + $0x1f8] sm:$0xff] %v2681
    // Predicated region
    $region50: #{tpu_custom_call.1} parent=1 // pred_check
      _
    $region51: #{tpu_custom_call.1} parent=1 // pred_check_branch
      %2747 = sbr.rel (0) target = $region53
    $region52: #{tpu_custom_call.1} parent=1 // pred_region
      %s2749 = ssub.s32 8192, 8192
      %2750 = vsyncadd [#allocation3], %s2749
      %s2751 = sshll.u32 [#allocation2], 4
      %s2752 = int_to_ptr.vmem [resolvable:$true] %s2751
      %2757 = dma.vmem_to_hbm [thread:$0]  %s2752, 8192, %s12, [#allocation3], 128, 128, 8
    $region53: #{tpu_custom_call.1} parent=1 // pred_fallthru
      _
    // Predicated region
    $region54: #{tpu_custom_call.1} parent=1 // pred_check
      _
    $region55: #{tpu_custom_call.1} parent=1 // pred_check_branch
      %2759 = sbr.rel (0) target = $region57
    $region56: #{tpu_custom_call.1} parent=1 // pred_region
      %2760 = dma.done [#allocation3], 8192
    $region57: #{tpu_custom_call.1} parent=1 // pred_fallthru
      _
    %2761 = vsyncpa [#allocation3], 1

</llo_original>
